<compile_context>
chip_gen: v5e
topology: v5e:2x2
jax: 0.10.0
libtpu: 0.0.40
codegen_flags: <defaults>
</compile_context>

<pallas_src>
import functools

import jax
import jax.numpy as jnp
from jax import lax
from jax.experimental import pallas as pl
from jax.experimental.pallas import tpu as pltpu

LANE = 128  # node/channel padding granularity (lane width)


def _round_up(n, m):
    return (n + m - 1) // m * m


def _node_tile(np_):
    """Row tile: largest of {512,256,128,64} dividing np_ with grid >= 2."""
    for t in (512, 256, 128, 64):
        if np_ % t == 0 and np_ // t >= 2:
            return t
    for t in (512, 256, 128, 64):
        if np_ % t == 0:
            return t
    return np_


_CP = pltpu.CompilerParams(
    dimension_semantics=("parallel",),
    vmem_limit_bytes=48 * 1024 * 1024,   # headroom for v7x's 64 MiB physical VMEM
)


# --------------------------------------------------------------------------
# kernel 1: kNN (in-kernel streaming top-k, no Np^2 HBM matrix) fused with the
#           encoder projection Hs = x @ Ws + b, Hd = x @ Wd
# --------------------------------------------------------------------------
def _knn_encode_kernel(xr_ref, xa_ref, rsq_ref, csq_ref, ws_ref, wd_ref, bs_ref,
                       idx_ref, hs_ref, hd_ref, *, k, tm, n_valid):
    i = pl.program_id(0)
    xr = xr_ref[...]                                   # [tm, C]  f32 (exact dists)
    xa = xa_ref[...]                                   # [Np, C]  f32
    npn = xa.shape[0]

    # squared distances via NT contraction (no transposed copy of xa)
    g = lax.dot_general(xr, xa, (((1,), (1,)), ((), ())),
                        preferred_element_type=jnp.float32)        # [tm, Np]
    d = rsq_ref[...] + csq_ref[...] - 2.0 * g
    row = i * tm + lax.broadcasted_iota(jnp.int32, (tm, 1), 0)     # [tm, 1]
    col = lax.broadcasted_iota(jnp.int32, (1, npn), 1)             # [1, Np]
    d = jnp.where((col == row) | (col >= n_valid), jnp.inf, d)     # no self / no pad

    # k smallest, first-occurrence tie-break (k is small & static)
    # TODO(synk): for very large Np, tile the column axis and merge a running
    #             [tm, k] top-k scratch instead of holding the full row block.
    sels = []
    for _ in range(k):
        mv = jnp.min(d, axis=-1, keepdims=True)                    # [tm, 1]
        sel = jnp.min(jnp.where(d <= mv, col, npn), axis=-1, keepdims=True)
        sels.append(sel)
        d = jnp.where(col == sel, jnp.inf, d)
    idx_ref[...] = jnp.concatenate(sels, axis=1)                   # [tm, k] int32

    # encoder projection (bf16 operands, f32 accumulation)
    xb = xr.astype(jnp.bfloat16)
    hs_ref[...] = (jnp.dot(xb, ws_ref[...], preferred_element_type=jnp.float32)
                   + bs_ref[...])
    hd_ref[...] = jnp.dot(xb, wd_ref[...], preferred_element_type=jnp.float32)


def knn_encode(x_pad, w_s, w_d, b_s, *, k, n_valid):
    np_, c = x_pad.shape
    ce_p = w_s.shape[1]
    tm = _node_tile(np_)
    sq = jnp.sum(x_pad * x_pad, axis=1)                            # norms once
    kernel = functools.partial(_knn_encode_kernel, k=k, tm=tm, n_valid=n_valid)
    return pl.pallas_call(
        kernel,
        out_shape=(jax.ShapeDtypeStruct((np_, k), jnp.int32),
                   jax.ShapeDtypeStruct((np_, ce_p), jnp.float32),
                   jax.ShapeDtypeStruct((np_, ce_p), jnp.float32)),
        grid=(np_ // tm,),
        in_specs=[
            pl.BlockSpec((tm, c), lambda i: (i, 0)),               # x rows
            pl.BlockSpec((np_, c), lambda i: (0, 0)),              # x (all, VMEM resident)
            pl.BlockSpec((tm, 1), lambda i: (i, 0)),               # row sq-norms
            pl.BlockSpec((1, np_), lambda i: (0, 0)),              # col sq-norms
            pl.BlockSpec((c, ce_p), lambda i: (0, 0)),             # Ws (bf16)
            pl.BlockSpec((c, ce_p), lambda i: (0, 0)),             # Wd (bf16)
            pl.BlockSpec((1, ce_p), lambda i: (0, 0)),             # b
        ],
        out_specs=(
            pl.BlockSpec((tm, k), lambda i: (i, 0)),
            pl.BlockSpec((tm, ce_p), lambda i: (i, 0)),
            pl.BlockSpec((tm, ce_p), lambda i: (i, 0)),
        ),
        compiler_params=_CP,
    )(x_pad, x_pad, sq.reshape(np_, 1), sq.reshape(1, np_), w_s, w_d,
      b_s.reshape(1, ce_p))


# --------------------------------------------------------------------------
# kernel 2: in-kernel gather+max over neighbour Hd rows (idx in SMEM, Hd slab
#           VMEM-resident) + EdgeConv combine + leaky_relu + mean/log_var
#           projections (separate s/d outputs -> no lane-unaligned slices)
# --------------------------------------------------------------------------
def _combine_proj_kernel(idx_ref, hs_ref, hd_ref, hdall_ref,
                         wms_ref, wls_ref, wmd_ref, wld_ref, bms_ref, bls_ref,
                         ms_ref, ls_ref, md_ref, ld_ref, mx_ref,
                         *, k, tn, slope):
    r0 = pl.program_id(0) * tn

    def gather_max(nloc, carry):
        base = (r0 + nloc) * k
        m = hdall_ref[pl.ds(idx_ref[base], 1), :]
        for t in range(1, k):
            m = jnp.maximum(m, hdall_ref[pl.ds(idx_ref[base + t], 1), :])
        mx_ref[pl.ds(nloc, 1), :] = m
        return carry

    lax.fori_loop(0, tn, gather_max, 0)

    h = hs_ref[...] + mx_ref[...] - hd_ref[...]                    # EdgeConv combine
    h = jnp.where(h >= 0.0, h, slope * h).astype(jnp.bfloat16)     # leaky_relu(0.2)
    ms_ref[...] = (jnp.dot(h, wms_ref[...], preferred_element_type=jnp.float32)
                   + bms_ref[...])
    ls_ref[...] = (jnp.dot(h, wls_ref[...], preferred_element_type=jnp.float32)
                   + bls_ref[...])
    md_ref[...] = jnp.dot(h, wmd_ref[...], preferred_element_type=jnp.float32)
    ld_ref[...] = jnp.dot(h, wld_ref[...], preferred_element_type=jnp.float32)


def combine_proj(idx_flat, hs, hd, w_ms, w_ls, w_md, w_ld, b_ms, b_ls, *, k,
                 slope=0.2):
    np_, ce_p = hs.shape
    zr = w_ms.shape[1]
    tn = _node_tile(np_)
    kernel = functools.partial(_combine_proj_kernel, k=k, tn=tn, slope=slope)
    wspec = pl.BlockSpec((ce_p, zr), lambda i: (0, 0))
    bspec = pl.BlockSpec((1, zr), lambda i: (0, 0))
    ospec = pl.BlockSpec((tn, zr), lambda i: (i, 0))
    return pl.pallas_call(
        kernel,
        out_shape=tuple(jax.ShapeDtypeStruct((np_, zr), jnp.float32)
                        for _ in range(4)),
        grid=(np_ // tn,),
        in_specs=[
            pl.BlockSpec(memory_space=pltpu.MemorySpace.SMEM),     # idx (flat)
            pl.BlockSpec((tn, ce_p), lambda i: (i, 0)),            # Hs tile
            pl.BlockSpec((tn, ce_p), lambda i: (i, 0)),            # Hd tile
            pl.BlockSpec((np_, ce_p), lambda i: (0, 0)),           # Hd full slab
            wspec, wspec, wspec, wspec, bspec, bspec,
        ],
        out_specs=(ospec, ospec, ospec, ospec),
        scratch_shapes=[pltpu.VMEM((tn, ce_p), jnp.float32)],
        compiler_params=_CP,
    )(idx_flat, hs, hd, hd, w_ms, w_ls, w_md, w_ld, b_ms, b_ls)


# --------------------------------------------------------------------------
# kernel 3: gather+max over neighbour mean_d/lv_d rows + reparametrize +
#           (PointShuffle folded into the weight-column permutation) + decoder
# --------------------------------------------------------------------------
def _reparam_decode_kernel(idx_ref, ms_ref, ls_ref, md_ref, ld_ref,
                           mdall_ref, ldall_ref, noise_ref, w_ref, b_ref,
                           o_ref, mxm_ref, mxl_ref, *, k, tn, r, z_dim):
    r0 = pl.program_id(0) * tn

    def gather_max(nloc, carry):
        base = (r0 + nloc) * k
        j0 = idx_ref[base]
        mm = mdall_ref[pl.ds(j0, 1), :]
        ml = ldall_ref[pl.ds(j0, 1), :]
        for t in range(1, k):
            j = idx_ref[base + t]
            mm = jnp.maximum(mm, mdall_ref[pl.ds(j, 1), :])
            ml = jnp.maximum(ml, ldall_ref[pl.ds(j, 1), :])
        mxm_ref[pl.ds(nloc, 1), :] = mm
        mxl_ref[pl.ds(nloc, 1), :] = ml
        return carry

    lax.fori_loop(0, tn, gather_max, 0)

    z_mean = ms_ref[...] + mxm_ref[...] - md_ref[...]
    z_log_var = ls_ref[...] + mxl_ref[...] - ld_ref[...]
    z = z_mean + noise_ref[...] * jnp.exp(0.5 * z_log_var)        # [tn, r*z_dim]
    # columns are laid out (r outer, z_dim inner) -> PointShuffle is row-major
    z2 = z.reshape(tn * r, z_dim).astype(jnp.bfloat16)
    o_ref[...] = (jnp.dot(z2, w_ref[...], preferred_element_type=jnp.float32)
                  + b_ref[...])


def reparam_decode(idx_flat, ms, ls, md, ld, noise, dec_w, dec_b, *, k, r):
    np_, zr = ms.shape
    z_dim = zr // r
    out_ch = dec_w.shape[1]
    tn = _node_tile(np_)
    kernel = functools.partial(_reparam_decode_kernel, k=k, tn=tn, r=r,
                               z_dim=z_dim)
    tspec = pl.BlockSpec((tn, zr), lambda i: (i, 0))
    fspec = pl.BlockSpec((np_, zr), lambda i: (0, 0))
    return pl.pallas_call(
        kernel,
        out_shape=jax.ShapeDtypeStruct((np_ * r, out_ch), jnp.float32),
        grid=(np_ // tn,),
        in_specs=[
            pl.BlockSpec(memory_space=pltpu.MemorySpace.SMEM),     # idx (flat)
            tspec, tspec, tspec, tspec,                            # ms, ls, md, ld
            fspec, fspec,                                          # md/ld full slabs
            tspec,                                                 # noise
            pl.BlockSpec((z_dim, out_ch), lambda i: (0, 0)),       # dec_w (bf16)
            pl.BlockSpec((1, out_ch), lambda i: (0, 0)),           # dec_b
        ],
        out_specs=pl.BlockSpec((tn * r, out_ch), lambda i: (i, 0)),
        scratch_shapes=[pltpu.VMEM((tn, zr), jnp.float32),
                        pltpu.VMEM((tn, zr), jnp.float32)],
        compiler_params=_CP,
    )(idx_flat, ms, ls, md, ld, md, ld, noise, dec_w, dec_b.reshape(1, out_ch))


# --------------------------------------------------------------------------
# full VariationalShuffle forward
# --------------------------------------------------------------------------
def variational_shuffle_forward(params, x, *, k, r, noise_key):
    n, c = x.shape
    assert k < n, "knn_graph without self loops needs k < number of points"
    np_ = _round_up(max(n, LANE), LANE)
    x_pad = jnp.pad(x.astype(jnp.float32), ((0, np_ - n), (0, 0)))

    ce = params["enc_ws"].shape[1]                    # encoder out = in_channels
    ce_p = _round_up(ce, LANE)                        # lane-dense hidden width
    zr = params["mean_ws"].shape[1]                   # z_dim * r
    z_dim = zr // r

    # --- encoder EdgeConv weights, zero-padded columns to ce_p ----------------
    def pad_cols(w):
        return jnp.zeros((w.shape[0], ce_p), jnp.float32).at[:, :w.shape[1]].set(w)

    w_s = pad_cols(params["enc_ws"]).astype(jnp.bfloat16)
    w_d = pad_cols(params["enc_wd"]).astype(jnp.bfloat16)
    b_s = jnp.zeros((ce_p,), jnp.float32).at[:ce].set(params["enc_b"])

    # --- kNN graph + encoder projection in one pass ---------------------------
    idx, hs, hd = knn_encode(x_pad, w_s, w_d, b_s, k=k, n_valid=n)
    idx_flat = idx.reshape(np_ * k)

    # --- mean/log_var weights: permute columns '(c2 r) -> (r c2)' so the
    #     PointShuffle becomes a row-major reshape in the decode kernel, and
    #     zero-pad rows ce -> ce_p to match the padded hidden width ------------
    def prep_ml_w(w):
        w = w.reshape(ce, z_dim, r).transpose(0, 2, 1).reshape(ce, zr)
        return jnp.zeros((ce_p, zr), jnp.float32).at[:ce].set(w).astype(jnp.bfloat16)

    def prep_ml_b(b):
        return b.reshape(z_dim, r).T.reshape(1, zr)

    w_ms, w_ls = prep_ml_w(params["mean_ws"]), prep_ml_w(params["lv_ws"])
    w_md, w_ld = prep_ml_w(params["mean_wd"]), prep_ml_w(params["lv_wd"])
    b_ms, b_ls = prep_ml_b(params["mean_b"]), prep_ml_b(params["lv_b"])

    ms, ls, md, ld = combine_proj(idx_flat, hs, hd, w_ms, w_ls, w_md, w_ld,
                                  b_ms, b_ls, k=k)

    # --- reparametrize + PointShuffle + decoder Linear -------------------------
    # TODO(synk): use the in-kernel TPU PRNG (pltpu.prng_seed / stateful_normal)
    # once the harness runs Mosaic-only; it has no CPU/interpret lowering, so the
    # iid Gaussian noise is drawn here (pre-shuffle layout, same distribution).
    noise = jax.random.normal(noise_key, (np_, zr), jnp.float32)
    dec_w = params["dec_w"].astype(jnp.bfloat16)
    out = reparam_decode(idx_flat, ms, ls, md, ld, noise, dec_w,
                         params["dec_b"], k=k, r=r)                 # [Np*r, out]
    return out[: n * r]


# --------------------------------------------------------------------------
def _init_linear(kw, kb, fan_in, fan_out):
    w = jax.random.normal(kw, (fan_in, fan_out), jnp.float32) / jnp.sqrt(float(fan_in))
    b = 0.01 * jax.random.normal(kb, (fan_out,), jnp.float32)
    return w, b


if __name__ == "__main__":
    key = jax.random.PRNGKey(0)
    keys = jax.random.split(key, 16)

    # small shapes consistent with the module
    N = 32            # number of points
    in_channels = 16  # = z_dim
    out_channels = 8
    k = 4
    r = 2
    z_dim = in_channels

    x = jax.random.normal(keys[0], (N, in_channels), dtype=jnp.float32)

    # EdgeConv nn = Linear(2*in, out) split into self-part Ws and diff-part Wd;
    # decoder = Linear(z_dim, out_channels)
    enc_ws, enc_b = _init_linear(keys[1], keys[2], in_channels, in_channels)
    enc_wd, _ = _init_linear(keys[3], keys[3], in_channels, in_channels)
    mean_ws, mean_b = _init_linear(keys[4], keys[5], in_channels, z_dim * r)
    mean_wd, _ = _init_linear(keys[6], keys[6], in_channels, z_dim * r)
    lv_ws, lv_b = _init_linear(keys[7], keys[8], in_channels, z_dim * r)
    lv_wd, _ = _init_linear(keys[9], keys[9], in_channels, z_dim * r)
    dec_w, dec_b = _init_linear(keys[10], keys[11], z_dim, out_channels)

    params = dict(
        enc_ws=enc_ws, enc_wd=enc_wd, enc_b=enc_b,
        mean_ws=mean_ws, mean_wd=mean_wd, mean_b=mean_b,
        lv_ws=lv_ws, lv_wd=lv_wd, lv_b=lv_b,
        dec_w=dec_w, dec_b=dec_b,
    )

    out = variational_shuffle_forward(params, x, k=k, r=r, noise_key=keys[12])
    out = jax.block_until_ready(out)

    assert out.shape == (N * r, out_channels), out.shape
    assert jnp.all(jnp.isfinite(out))
    print("KERNEL_OK")
</pallas_src>

<mosaic_0001>
module attributes {stable_mosaic.version = 11 : i64} {
  func.func @_knn_encode_kernel(%arg0: i32, %arg1: memref<64x16xf32, #tpu.memory_space<vmem>>, %arg2: memref<128x16xf32, #tpu.memory_space<vmem>>, %arg3: memref<64x1xf32, #tpu.memory_space<vmem>>, %arg4: memref<1x128xf32, #tpu.memory_space<vmem>>, %arg5: memref<16x128xbf16, #tpu.memory_space<vmem>>, %arg6: memref<16x128xbf16, #tpu.memory_space<vmem>>, %arg7: memref<1x128xf32, #tpu.memory_space<vmem>>, %arg8: memref<64x4xi32, #tpu.memory_space<vmem>>, %arg9: memref<64x128xf32, #tpu.memory_space<vmem>>, %arg10: memref<64x128xf32, #tpu.memory_space<vmem>>) attributes {dimension_semantics = [#tpu.dimension_semantics<parallel>], iteration_bounds = array<i64: 2>, scalar_prefetch = 0 : i64, scratch_operands = 0 : i64, tpu.core_type = #tpu.core_type<tc>, window_params = [{transform_indices = @transform_0, window_bounds = array<i64: 64, 16>}, {pipeline_mode = #tpu.pipeline_mode<synchronous>, transform_indices = @transform_1, window_bounds = array<i64: 128, 16>}, {transform_indices = @transform_2, window_bounds = array<i64: 64, 1>}, {pipeline_mode = #tpu.pipeline_mode<synchronous>, transform_indices = @transform_3, window_bounds = array<i64: 1, 128>}, {pipeline_mode = #tpu.pipeline_mode<synchronous>, transform_indices = @transform_4, window_bounds = array<i64: 16, 128>}, {pipeline_mode = #tpu.pipeline_mode<synchronous>, transform_indices = @transform_5, window_bounds = array<i64: 16, 128>}, {pipeline_mode = #tpu.pipeline_mode<synchronous>, transform_indices = @transform_6, window_bounds = array<i64: 1, 128>}, {transform_indices = @transform_7, window_bounds = array<i64: 64, 4>}, {transform_indices = @transform_8, window_bounds = array<i64: 64, 128>}, {transform_indices = @transform_9, window_bounds = array<i64: 64, 128>}]} {
    %c0 = arith.constant 0 : index
    %c0_0 = arith.constant 0 : index
    %0 = vector.load %arg1[%c0, %c0_0] : memref<64x16xf32, #tpu.memory_space<vmem>>, vector<64x16xf32>
    %c0_1 = arith.constant 0 : index
    %c0_2 = arith.constant 0 : index
    %1 = vector.load %arg2[%c0_1, %c0_2] : memref<128x16xf32, #tpu.memory_space<vmem>>, vector<128x16xf32>
    %cst = arith.constant dense<0.000000e+00> : vector<64x128xf32>
    %2 = tpu.matmul %0, %1, %cst {dimension_numbers = #tpu.dot_dimension_numbers<[1], [1], [0], [0], [0, 0, 1, 0], [], []>} : vector<64x16xf32>, vector<128x16xf32>, vector<64x128xf32> -> vector<64x128xf32>
    %c0_3 = arith.constant 0 : index
    %c0_4 = arith.constant 0 : index
    %3 = vector.load %arg3[%c0_3, %c0_4] : memref<64x1xf32, #tpu.memory_space<vmem>>, vector<64x1xf32>
    %c0_5 = arith.constant 0 : index
    %c0_6 = arith.constant 0 : index
    %4 = vector.load %arg4[%c0_5, %c0_6] : memref<1x128xf32, #tpu.memory_space<vmem>>, vector<1x128xf32>
    %5 = vector.broadcast %3 : vector<64x1xf32> to vector<64x128xf32>
    %6 = vector.broadcast %4 : vector<1x128xf32> to vector<64x128xf32>
    %7 = arith.addf %5, %6 : vector<64x128xf32>
    %cst_7 = arith.constant 2.000000e+00 : f32
    %8 = vector.broadcast %cst_7 : f32 to vector<64x128xf32>
    %9 = arith.mulf %8, %2 : vector<64x128xf32>
    %10 = arith.subf %7, %9 : vector<64x128xf32>
    %c64_i32 = arith.constant 64 : i32
    %11 = arith.muli %arg0, %c64_i32 : i32
    %12 = tpu.iota {dimensions = array<i32: 0>} : vector<64x1xi32>
    %13 = vector.broadcast %11 : i32 to vector<64x1xi32>
    %14 = arith.addi %13, %12 : vector<64x1xi32>
    %15 = tpu.iota {dimensions = array<i32: 1>} : vector<1x128xi32>
    %16 = vector.broadcast %15 : vector<1x128xi32> to vector<64x128xi32>
    %17 = vector.broadcast %14 : vector<64x1xi32> to vector<64x128xi32>
    %18 = arith.cmpi eq, %16, %17 : vector<64x128xi32>
    %c32_i32 = arith.constant 32 : i32
    %19 = vector.broadcast %c32_i32 : i32 to vector<1x128xi32>
    %20 = arith.cmpi sge, %15, %19 : vector<1x128xi32>
    %21 = vector.broadcast %20 : vector<1x128xi1> to vector<64x128xi1>
    %22 = arith.ori %18, %21 : vector<64x128xi1>
    %cst_8 = arith.constant 0x7F800000 : f32
    %23 = vector.broadcast %cst_8 : f32 to vector<64x128xf32>
    %24 = arith.select %22, %23, %10 : vector<64x128xi1>, vector<64x128xf32>
    %cst_9 = arith.constant dense<0x7F800000> : vector<64xf32>
    %25 = vector.multi_reduction <minimumf>, %24, %cst_9 [1] : vector<64x128xf32> to vector<64xf32>
    %26 = vector.shape_cast %25 : vector<64xf32> to vector<64x1xf32>
    %27 = vector.broadcast %26 : vector<64x1xf32> to vector<64x128xf32>
    %28 = arith.cmpf ole, %24, %27 : vector<64x128xf32>
    %c128_i32 = arith.constant 128 : i32
    %29 = vector.shape_cast %15 : vector<1x128xi32> to vector<1x128xi32>
    %30 = vector.broadcast %29 : vector<1x128xi32> to vector<64x128xi32>
    %31 = vector.broadcast %c128_i32 : i32 to vector<64x128xi32>
    %32 = arith.select %28, %30, %31 : vector<64x128xi1>, vector<64x128xi32>
    %cst_10 = arith.constant dense<2147483647> : vector<64xi32>
    %33 = vector.multi_reduction <minsi>, %32, %cst_10 [1] : vector<64x128xi32> to vector<64xi32>
    %34 = vector.shape_cast %33 : vector<64xi32> to vector<64x1xi32>
    %35 = vector.broadcast %15 : vector<1x128xi32> to vector<64x128xi32>
    %36 = vector.broadcast %34 : vector<64x1xi32> to vector<64x128xi32>
    %37 = arith.cmpi eq, %35, %36 : vector<64x128xi32>
    %cst_11 = arith.constant 0x7F800000 : f32
    %38 = vector.broadcast %cst_11 : f32 to vector<64x128xf32>
    %39 = arith.select %37, %38, %24 : vector<64x128xi1>, vector<64x128xf32>
    %cst_12 = arith.constant dense<0x7F800000> : vector<64xf32>
    %40 = vector.multi_reduction <minimumf>, %39, %cst_12 [1] : vector<64x128xf32> to vector<64xf32>
    %41 = vector.shape_cast %40 : vector<64xf32> to vector<64x1xf32>
    %42 = vector.broadcast %41 : vector<64x1xf32> to vector<64x128xf32>
    %43 = arith.cmpf ole, %39, %42 : vector<64x128xf32>
    %c128_i32_13 = arith.constant 128 : i32
    %44 = vector.shape_cast %15 : vector<1x128xi32> to vector<1x128xi32>
    %45 = vector.broadcast %44 : vector<1x128xi32> to vector<64x128xi32>
    %46 = vector.broadcast %c128_i32_13 : i32 to vector<64x128xi32>
    %47 = arith.select %43, %45, %46 : vector<64x128xi1>, vector<64x128xi32>
    %cst_14 = arith.constant dense<2147483647> : vector<64xi32>
    %48 = vector.multi_reduction <minsi>, %47, %cst_14 [1] : vector<64x128xi32> to vector<64xi32>
    %49 = vector.shape_cast %48 : vector<64xi32> to vector<64x1xi32>
    %50 = vector.broadcast %15 : vector<1x128xi32> to vector<64x128xi32>
    %51 = vector.broadcast %49 : vector<64x1xi32> to vector<64x128xi32>
    %52 = arith.cmpi eq, %50, %51 : vector<64x128xi32>
    %cst_15 = arith.constant 0x7F800000 : f32
    %53 = vector.broadcast %cst_15 : f32 to vector<64x128xf32>
    %54 = arith.select %52, %53, %39 : vector<64x128xi1>, vector<64x128xf32>
    %cst_16 = arith.constant dense<0x7F800000> : vector<64xf32>
    %55 = vector.multi_reduction <minimumf>, %54, %cst_16 [1] : vector<64x128xf32> to vector<64xf32>
    %56 = vector.shape_cast %55 : vector<64xf32> to vector<64x1xf32>
    %57 = vector.broadcast %56 : vector<64x1xf32> to vector<64x128xf32>
    %58 = arith.cmpf ole, %54, %57 : vector<64x128xf32>
    %c128_i32_17 = arith.constant 128 : i32
    %59 = vector.shape_cast %15 : vector<1x128xi32> to vector<1x128xi32>
    %60 = vector.broadcast %59 : vector<1x128xi32> to vector<64x128xi32>
    %61 = vector.broadcast %c128_i32_17 : i32 to vector<64x128xi32>
    %62 = arith.select %58, %60, %61 : vector<64x128xi1>, vector<64x128xi32>
    %cst_18 = arith.constant dense<2147483647> : vector<64xi32>
    %63 = vector.multi_reduction <minsi>, %62, %cst_18 [1] : vector<64x128xi32> to vector<64xi32>
    %64 = vector.shape_cast %63 : vector<64xi32> to vector<64x1xi32>
    %65 = vector.broadcast %15 : vector<1x128xi32> to vector<64x128xi32>
    %66 = vector.broadcast %64 : vector<64x1xi32> to vector<64x128xi32>
    %67 = arith.cmpi eq, %65, %66 : vector<64x128xi32>
    %cst_19 = arith.constant 0x7F800000 : f32
    %68 = vector.broadcast %cst_19 : f32 to vector<64x128xf32>
    %69 = arith.select %67, %68, %54 : vector<64x128xi1>, vector<64x128xf32>
    %cst_20 = arith.constant dense<0x7F800000> : vector<64xf32>
    %70 = vector.multi_reduction <minimumf>, %69, %cst_20 [1] : vector<64x128xf32> to vector<64xf32>
    %71 = vector.shape_cast %70 : vector<64xf32> to vector<64x1xf32>
    %72 = vector.broadcast %71 : vector<64x1xf32> to vector<64x128xf32>
    %73 = arith.cmpf ole, %69, %72 : vector<64x128xf32>
    %c128_i32_21 = arith.constant 128 : i32
    %74 = vector.shape_cast %15 : vector<1x128xi32> to vector<1x128xi32>
    %75 = vector.broadcast %74 : vector<1x128xi32> to vector<64x128xi32>
    %76 = vector.broadcast %c128_i32_21 : i32 to vector<64x128xi32>
    %77 = arith.select %73, %75, %76 : vector<64x128xi1>, vector<64x128xi32>
    %cst_22 = arith.constant dense<2147483647> : vector<64xi32>
    %78 = vector.multi_reduction <minsi>, %77, %cst_22 [1] : vector<64x128xi32> to vector<64xi32>
    %79 = vector.shape_cast %78 : vector<64xi32> to vector<64x1xi32>
    %80 = tpu.concatenate %34, %49, %64, %79 in 1 : vector<64x1xi32>, vector<64x1xi32>, vector<64x1xi32>, vector<64x1xi32> -> vector<64x4xi32>
    %c0_23 = arith.constant 0 : index
    %c0_24 = arith.constant 0 : index
    %81 = vector.load %arg8[%c0_23, %c0_24] : memref<64x4xi32, #tpu.memory_space<vmem>>, vector<64x4xi32>
    tpu.vector_store %arg8[%c0_23, %c0_24], %80 {strides = array<i32>} : memref<64x4xi32, #tpu.memory_space<vmem>>, vector<64x4xi32>,
    %82 = arith.truncf %0 : vector<64x16xf32> to vector<64x16xbf16>
    %c0_25 = arith.constant 0 : index
    %c0_26 = arith.constant 0 : index
    %83 = vector.load %arg5[%c0_25, %c0_26] : memref<16x128xbf16, #tpu.memory_space<vmem>>, vector<16x128xbf16>
    %cst_27 = arith.constant dense<0.000000e+00> : vector<64x128xf32>
    %84 = tpu.matmul %82, %83, %cst_27 {dimension_numbers = #tpu.dot_dimension_numbers<[1], [0], [0], [1], [0, 0, 1, 1], [], []>} : vector<64x16xbf16>, vector<16x128xbf16>, vector<64x128xf32> -> vector<64x128xf32>
    %c0_28 = arith.constant 0 : index
    %c0_29 = arith.constant 0 : index
    %85 = vector.load %arg7[%c0_28, %c0_29] : memref<1x128xf32, #tpu.memory_space<vmem>>, vector<1x128xf32>
    %86 = vector.broadcast %85 : vector<1x128xf32> to vector<64x128xf32>
    %87 = arith.addf %84, %86 : vector<64x128xf32>
    %c0_30 = arith.constant 0 : index
    %c0_31 = arith.constant 0 : index
    %88 = vector.load %arg9[%c0_30, %c0_31] : memref<64x128xf32, #tpu.memory_space<vmem>>, vector<64x128xf32>
    tpu.vector_store %arg9[%c0_30, %c0_31], %87 {strides = array<i32>} : memref<64x128xf32, #tpu.memory_space<vmem>>, vector<64x128xf32>,
    %c0_32 = arith.constant 0 : index
    %c0_33 = arith.constant 0 : index
    %89 = vector.load %arg6[%c0_32, %c0_33] : memref<16x128xbf16, #tpu.memory_space<vmem>>, vector<16x128xbf16>
    %cst_34 = arith.constant dense<0.000000e+00> : vector<64x128xf32>
    %90 = tpu.matmul %82, %89, %cst_34 {dimension_numbers = #tpu.dot_dimension_numbers<[1], [0], [0], [1], [0, 0, 1, 1], [], []>} : vector<64x16xbf16>, vector<16x128xbf16>, vector<64x128xf32> -> vector<64x128xf32>
    %c0_35 = arith.constant 0 : index
    %c0_36 = arith.constant 0 : index
    %91 = vector.load %arg10[%c0_35, %c0_36] : memref<64x128xf32, #tpu.memory_space<vmem>>, vector<64x128xf32>
    tpu.vector_store %arg10[%c0_35, %c0_36], %90 {strides = array<i32>} : memref<64x128xf32, #tpu.memory_space<vmem>>, vector<64x128xf32>,
    return
  }
  func.func @transform_0(%arg0: i32) -> (i32, i32) {
    %c0_i32 = arith.constant 0 : i32
    %c0_i32_0 = arith.constant 0 : i32
    return %arg0, %c0_i32 : i32, i32
  }
  func.func @transform_1(%arg0: i32) -> (i32, i32) {
    %c0_i32 = arith.constant 0 : i32
    %c0_i32_0 = arith.constant 0 : i32
    %c0_i32_1 = arith.constant 0 : i32
    return %c0_i32, %c0_i32_0 : i32, i32
  }
  func.func @transform_2(%arg0: i32) -> (i32, i32) {
    %c0_i32 = arith.constant 0 : i32
    %c0_i32_0 = arith.constant 0 : i32
    return %arg0, %c0_i32 : i32, i32
  }
  func.func @transform_3(%arg0: i32) -> (i32, i32) {
    %c0_i32 = arith.constant 0 : i32
    %c0_i32_0 = arith.constant 0 : i32
    %c0_i32_1 = arith.constant 0 : i32
    return %c0_i32, %c0_i32_0 : i32, i32
  }
  func.func @transform_4(%arg0: i32) -> (i32, i32) {
    %c0_i32 = arith.constant 0 : i32
    %c0_i32_0 = arith.constant 0 : i32
    %c0_i32_1 = arith.constant 0 : i32
    return %c0_i32, %c0_i32_0 : i32, i32
  }
  func.func @transform_5(%arg0: i32) -> (i32, i32) {
    %c0_i32 = arith.constant 0 : i32
    %c0_i32_0 = arith.constant 0 : i32
    %c0_i32_1 = arith.constant 0 : i32
    return %c0_i32, %c0_i32_0 : i32, i32
  }
  func.func @transform_6(%arg0: i32) -> (i32, i32) {
    %c0_i32 = arith.constant 0 : i32
    %c0_i32_0 = arith.constant 0 : i32
    %c0_i32_1 = arith.constant 0 : i32
    return %c0_i32, %c0_i32_0 : i32, i32
  }
  func.func @transform_7(%arg0: i32) -> (i32, i32) {
    %c0_i32 = arith.constant 0 : i32
    %c0_i32_0 = arith.constant 0 : i32
    return %arg0, %c0_i32 : i32, i32
  }
  func.func @transform_8(%arg0: i32) -> (i32, i32) {
    %c0_i32 = arith.constant 0 : i32
    %c0_i32_0 = arith.constant 0 : i32
    return %arg0, %c0_i32 : i32, i32
  }
  func.func @transform_9(%arg0: i32) -> (i32, i32) {
    %c0_i32 = arith.constant 0 : i32
    %c0_i32_0 = arith.constant 0 : i32
    return %arg0, %c0_i32 : i32, i32
  }
}

</mosaic_0001>

<llo_original>
// kernel: tpu_custom_call.1
$region0: #{tpu_custom_call.1}
  #allocation0 [shape = 'u32[]', space=smem, size = 0x4, offset = 0x4, fixed_abs, tag = 'smem constant byte address 0x4 - core index']
  #allocation1 [shape = 'u32[72,128]{1,0:T(1,128)}', space=vmem, size = 0x9000, scoped, tag = 'internal scratch']
  %s0 = inlined_call_operand.vmem [shape: f32[128,16], index: 0, kind: input, shape index: {}]
  %s1 = inlined_call_operand.vmem [shape: f32[128,16], index: 1, kind: input, shape index: {}]
  %s2 = inlined_call_operand.vmem [shape: f32[128,1], index: 2, kind: input, shape index: {}]
  %s3 = inlined_call_operand.vmem [shape: f32[1,128], index: 3, kind: input, shape index: {}]
  %s4 = inlined_call_operand.vmem [shape: bf16[16,128], index: 4, kind: input, shape index: {}]
  %s5 = inlined_call_operand.vmem [shape: bf16[16,128], index: 5, kind: input, shape index: {}]
  %s6 = inlined_call_operand.vmem [shape: f32[1,128], index: 6, kind: input, shape index: {}]
  %s7 = inlined_call_operand.vmem [shape: s32[128,4], index: 7, kind: output, shape index: {0}]
  %s8 = inlined_call_operand.hbm [shape: f32[128,128], index: 8, kind: output, shape index: {1}]
  %s9 = inlined_call_operand.hbm [shape: f32[128,128], index: 9, kind: output, shape index: {2}]
  %10 = xla_tuple %s7, %s8, %s9
  %s11 = sld [smem:[#allocation0]]
  $region77: #{tpu_custom_call.1} parent=0
    _
  %s13 = ssub.s32 1, %s11
  %s14 = scalar_select 0, %s13, %s11
  $region1: #{tpu_custom_call.1} parent=0
    #allocation2 [shape = 'u8[65536]{0}', space=vmem, size = 0x10000, scoped, tag = 'output window, operand 1']
    #allocation3 [shape = 's32[2]{0}', space=sflag, size = 0x8, scoped, tag = 'scoped memory for tpu_custom_call.1']
    #allocation4 [shape = 'u8[65536]{0}', space=vmem, size = 0x10000, scoped, tag = 'output window, operand 2']
    #allocation5 [shape = 's32[2]{0}', space=sflag, size = 0x8, scoped, tag = 'scoped memory for tpu_custom_call.1']
    %15 = vsyncpa [#allocation3], 0
    %s16 = scalar_lea.sflag [#allocation3], 1
    %17 = vsyncpa %s16, 0
    %18 = vsyncpa [#allocation5], 0
    %s19 = scalar_lea.sflag [#allocation5], 1
    %20 = vsyncpa %s19, 0
    loop: start=0, step=1, limit=4
    $region2: #{tpu_custom_call.1} parent=1 // loop_pre_header
      _
    $region3: #{tpu_custom_call.1} parent=1 // loop_header
      %s22 = sphi 0, %s26
      %p23 = scmp.ge.s32.totalorder %s22, 4
      %s32 = sphi 0, %s34
      %s35 = sphi 0, %s32
      %s36 = sphi 0, %s35
      %s52 = sphi 0, %s36
      %s56 = sphi 0, %s56
      %s58 = sphi 0, %s56
      %s59 = sphi 0, %s58
      %s73 = sphi 0, %s59
      %s79 = sphi 0, %s81
      %s82 = sphi 0, %s79
      %s83 = sphi 0, %s82
      %s99 = sphi 0, %s83
      %s103 = sphi 0, %s103
      %s105 = sphi 0, %s103
      %s106 = sphi 0, %s105
      %s120 = sphi 0, %s106
      %s124 = sphi 0, %s124
      %s126 = sphi 0, %s124
      %s127 = sphi 0, %s126
      %s141 = sphi 0, %s127
      %s145 = sphi 0, %s145
      %s147 = sphi 0, %s145
      %s148 = sphi 0, %s147
      %s162 = sphi 0, %s148
      %s166 = sphi 0, %s166
      %s168 = sphi 0, %s166
      %s169 = sphi 0, %s168
      %s183 = sphi 0, %s169
      %s189 = sphi 0, %s191
      %s192 = sphi 0, %s189
      %s193 = sphi 0, %s192
      %s209 = sphi 0, %s193
      %s215 = sphi 0, %s217
      %s218 = sphi 0, %s215
      %s219 = sphi 0, %s218
      %s235 = sphi 0, %s219
      %s241 = sphi 0, %s243
      %s244 = sphi 0, %s241
      %s245 = sphi 0, %s244
      %s261 = sphi 0, %s245
    $region4: #{tpu_custom_call.1} parent=1 // loop_header_branch
      %25 = sbr.rel (%p23) target = $region8
    $region5: #{tpu_custom_call.1} parent=1 // loop_body
      %s27 = ssub.s32 %s22, 1
      %s28 = ssub.s32 %s22, 2
      %s29 = sadd.s32 %s22, 1
      %s30 = ssub.s32 %s22, %s29
      %p31 = scmp.eq.s32.totalorder %s30, 0
      %s33 = sadd.s32 %s32, 1
      %s34 = scalar_select %p31, %s32, %s33
      %p37 = pneg %p31
      %p38 = scmp.eq.s32.totalorder %s22, 1
      %p39 = por %p37, %p38
      %p40 = scmp.ne.s32.totalorder %s32, %s35
      %p41 = scmp.eq.s32.totalorder %s22, 0
      %p42 = por %p40, %p41
      %p43 = scmp.ne.s32.totalorder %s32, %s35
      %p44 = scmp.eq.s32.totalorder %s27, 1
      %p45 = por %p43, %p44
      %p46 = scmp.ne.s32.totalorder %s35, %s36
      %p47 = scmp.eq.s32.totalorder %s27, 0
      %p48 = por %p46, %p47
      %p49 = scmp.ne.s32.totalorder %s35, %s36
      %p50 = scmp.eq.s32.totalorder %s28, 1
      %p51 = por %p49, %p50
      %p53 = scmp.ne.s32.totalorder %s36, %s52
      %p54 = scmp.eq.s32.totalorder %s28, 0
      %p55 = por %p53, %p54
      %s57 = sadd.s32 %s56, 1
      %p60 = scmp.eq.s32.totalorder %s22, 1
      %p61 = scmp.ne.s32.totalorder %s56, %s58
      %p62 = scmp.eq.s32.totalorder %s22, 0
      %p63 = por %p61, %p62
      %p64 = scmp.ne.s32.totalorder %s56, %s58
      %p65 = scmp.eq.s32.totalorder %s27, 1
      %p66 = por %p64, %p65
      %p67 = scmp.ne.s32.totalorder %s58, %s59
      %p68 = scmp.eq.s32.totalorder %s27, 0
      %p69 = por %p67, %p68
      %p70 = scmp.ne.s32.totalorder %s58, %s59
      %p71 = scmp.eq.s32.totalorder %s28, 1
      %p72 = por %p70, %p71
      %p74 = scmp.ne.s32.totalorder %s59, %s73
      %p75 = scmp.eq.s32.totalorder %s28, 0
      %p76 = por %p74, %p75
      %s77 = ssub.s32 %s22, %s29
      %p78 = scmp.eq.s32.totalorder %s77, 0
      %s80 = sadd.s32 %s79, 1
      %s81 = scalar_select %p78, %s79, %s80
      %p84 = pneg %p78
      %p85 = scmp.eq.s32.totalorder %s22, 1
      %p86 = por %p84, %p85
      %p87 = scmp.ne.s32.totalorder %s79, %s82
      %p88 = scmp.eq.s32.totalorder %s22, 0
      %p89 = por %p87, %p88
      %p90 = scmp.ne.s32.totalorder %s79, %s82
      %p91 = scmp.eq.s32.totalorder %s27, 1
      %p92 = por %p90, %p91
      %p93 = scmp.ne.s32.totalorder %s82, %s83
      %p94 = scmp.eq.s32.totalorder %s27, 0
      %p95 = por %p93, %p94
      %p96 = scmp.ne.s32.totalorder %s82, %s83
      %p97 = scmp.eq.s32.totalorder %s28, 1
      %p98 = por %p96, %p97
      %p100 = scmp.ne.s32.totalorder %s83, %s99
      %p101 = scmp.eq.s32.totalorder %s28, 0
      %p102 = por %p100, %p101
      %s104 = sadd.s32 %s103, 1
      %p107 = scmp.eq.s32.totalorder %s22, 1
      %p108 = scmp.ne.s32.totalorder %s103, %s105
      %p109 = scmp.eq.s32.totalorder %s22, 0
      %p110 = por %p108, %p109
      %p111 = scmp.ne.s32.totalorder %s103, %s105
      %p112 = scmp.eq.s32.totalorder %s27, 1
      %p113 = por %p111, %p112
      %p114 = scmp.ne.s32.totalorder %s105, %s106
      %p115 = scmp.eq.s32.totalorder %s27, 0
      %p116 = por %p114, %p115
      %p117 = scmp.ne.s32.totalorder %s105, %s106
      %p118 = scmp.eq.s32.totalorder %s28, 1
      %p119 = por %p117, %p118
      %p121 = scmp.ne.s32.totalorder %s106, %s120
      %p122 = scmp.eq.s32.totalorder %s28, 0
      %p123 = por %p121, %p122
      %s125 = sadd.s32 %s124, 1
      %p128 = scmp.eq.s32.totalorder %s22, 1
      %p129 = scmp.ne.s32.totalorder %s124, %s126
      %p130 = scmp.eq.s32.totalorder %s22, 0
      %p131 = por %p129, %p130
      %p132 = scmp.ne.s32.totalorder %s124, %s126
      %p133 = scmp.eq.s32.totalorder %s27, 1
      %p134 = por %p132, %p133
      %p135 = scmp.ne.s32.totalorder %s126, %s127
      %p136 = scmp.eq.s32.totalorder %s27, 0
      %p137 = por %p135, %p136
      %p138 = scmp.ne.s32.totalorder %s126, %s127
      %p139 = scmp.eq.s32.totalorder %s28, 1
      %p140 = por %p138, %p139
      %p142 = scmp.ne.s32.totalorder %s127, %s141
      %p143 = scmp.eq.s32.totalorder %s28, 0
      %p144 = por %p142, %p143
      %s146 = sadd.s32 %s145, 1
      %p149 = scmp.eq.s32.totalorder %s22, 1
      %p150 = scmp.ne.s32.totalorder %s145, %s147
      %p151 = scmp.eq.s32.totalorder %s22, 0
      %p152 = por %p150, %p151
      %p153 = scmp.ne.s32.totalorder %s145, %s147
      %p154 = scmp.eq.s32.totalorder %s27, 1
      %p155 = por %p153, %p154
      %p156 = scmp.ne.s32.totalorder %s147, %s148
      %p157 = scmp.eq.s32.totalorder %s27, 0
      %p158 = por %p156, %p157
      %p159 = scmp.ne.s32.totalorder %s147, %s148
      %p160 = scmp.eq.s32.totalorder %s28, 1
      %p161 = por %p159, %p160
      %p163 = scmp.ne.s32.totalorder %s148, %s162
      %p164 = scmp.eq.s32.totalorder %s28, 0
      %p165 = por %p163, %p164
      %s167 = sadd.s32 %s166, 1
      %p170 = scmp.eq.s32.totalorder %s22, 1
      %p171 = scmp.ne.s32.totalorder %s166, %s168
      %p172 = scmp.eq.s32.totalorder %s22, 0
      %p173 = por %p171, %p172
      %p174 = scmp.ne.s32.totalorder %s166, %s168
      %p175 = scmp.eq.s32.totalorder %s27, 1
      %p176 = por %p174, %p175
      %p177 = scmp.ne.s32.totalorder %s168, %s169
      %p178 = scmp.eq.s32.totalorder %s27, 0
      %p179 = por %p177, %p178
      %p180 = scmp.ne.s32.totalorder %s168, %s169
      %p181 = scmp.eq.s32.totalorder %s28, 1
      %p182 = por %p180, %p181
      %p184 = scmp.ne.s32.totalorder %s169, %s183
      %p185 = scmp.eq.s32.totalorder %s28, 0
      %p186 = por %p184, %p185
      %s187 = ssub.s32 %s22, %s29
      %p188 = scmp.eq.s32.totalorder %s187, 0
      %s190 = sadd.s32 %s189, 1
      %s191 = scalar_select %p188, %s189, %s190
      %p194 = pneg %p188
      %p195 = scmp.eq.s32.totalorder %s22, 1
      %p196 = por %p194, %p195
      %p197 = scmp.ne.s32.totalorder %s189, %s192
      %p198 = scmp.eq.s32.totalorder %s22, 0
      %p199 = por %p197, %p198
      %p200 = scmp.ne.s32.totalorder %s189, %s192
      %p201 = scmp.eq.s32.totalorder %s27, 1
      %p202 = por %p200, %p201
      %p203 = scmp.ne.s32.totalorder %s192, %s193
      %p204 = scmp.eq.s32.totalorder %s27, 0
      %p205 = por %p203, %p204
      %p206 = scmp.ne.s32.totalorder %s192, %s193
      %p207 = scmp.eq.s32.totalorder %s28, 1
      %p208 = por %p206, %p207
      %p210 = scmp.ne.s32.totalorder %s193, %s209
      %p211 = scmp.eq.s32.totalorder %s28, 0
      %p212 = por %p210, %p211
      %s213 = ssub.s32 %s22, %s29
      %p214 = scmp.eq.s32.totalorder %s213, 0
      %s216 = sadd.s32 %s215, 1
      %s217 = scalar_select %p214, %s215, %s216
      %p220 = pneg %p214
      %p221 = scmp.eq.s32.totalorder %s22, 1
      %p222 = por %p220, %p221
      %p223 = scmp.ne.s32.totalorder %s215, %s218
      %p224 = scmp.eq.s32.totalorder %s22, 0
      %p225 = por %p223, %p224
      %p226 = scmp.ne.s32.totalorder %s215, %s218
      %p227 = scmp.eq.s32.totalorder %s27, 1
      %p228 = por %p226, %p227
      %p229 = scmp.ne.s32.totalorder %s218, %s219
      %p230 = scmp.eq.s32.totalorder %s27, 0
      %p231 = por %p229, %p230
      %p232 = scmp.ne.s32.totalorder %s218, %s219
      %p233 = scmp.eq.s32.totalorder %s28, 1
      %p234 = por %p232, %p233
      %p236 = scmp.ne.s32.totalorder %s219, %s235
      %p237 = scmp.eq.s32.totalorder %s28, 0
      %p238 = por %p236, %p237
      %s239 = ssub.s32 %s22, %s29
      %p240 = scmp.eq.s32.totalorder %s239, 0
      %s242 = sadd.s32 %s241, 1
      %s243 = scalar_select %p240, %s241, %s242
      %p246 = pneg %p240
      %p247 = scmp.eq.s32.totalorder %s22, 1
      %p248 = por %p246, %p247
      %p249 = scmp.ne.s32.totalorder %s241, %s244
      %p250 = scmp.eq.s32.totalorder %s22, 0
      %p251 = por %p249, %p250
      %p252 = scmp.ne.s32.totalorder %s241, %s244
      %p253 = scmp.eq.s32.totalorder %s27, 1
      %p254 = por %p252, %p253
      %p255 = scmp.ne.s32.totalorder %s244, %s245
      %p256 = scmp.eq.s32.totalorder %s27, 0
      %p257 = por %p255, %p256
      %p258 = scmp.ne.s32.totalorder %s244, %s245
      %p259 = scmp.eq.s32.totalorder %s28, 1
      %p260 = por %p258, %p259
      %p262 = scmp.ne.s32.totalorder %s245, %s261
      %p263 = scmp.eq.s32.totalorder %s28, 0
      %p264 = por %p262, %p263
      %p265 = scmp.le.s32.totalorder 1, %s22
      %p266 = scmp.lt.s32.totalorder %s22, 3
      %p267 = pnand %p265, %p266
      %p268 = pneg %p267
      // Predicated region
      $region9: #{tpu_custom_call.1} parent=5 // pred_check
        _
      $region10: #{tpu_custom_call.1} parent=5 // pred_check_branch
        %270 = sbr.rel (%p267) target = $region12
      $region11: #{tpu_custom_call.1} parent=5 // pred_region
        %s271 = ssub.s32 %s22, 1
        // Predicated region
        $region13: #{tpu_custom_call.1} parent=11 // pred_check
          %p272 = pneg %p69
        $region14: #{tpu_custom_call.1} parent=11 // pred_check_branch
          %274 = sbr.rel (%p272) target = $region16
        $region15: #{tpu_custom_call.1} parent=11 // pred_region
          _
        $region16: #{tpu_custom_call.1} parent=11 // pred_fallthru
          _
        // Predicated region
        $region17: #{tpu_custom_call.1} parent=11 // pred_check
          %p275 = pneg %p116
        $region18: #{tpu_custom_call.1} parent=11 // pred_check_branch
          %277 = sbr.rel (%p275) target = $region20
        $region19: #{tpu_custom_call.1} parent=11 // pred_region
          _
        $region20: #{tpu_custom_call.1} parent=11 // pred_fallthru
          _
        // Predicated region
        $region21: #{tpu_custom_call.1} parent=11 // pred_check
          %p278 = pneg %p137
        $region22: #{tpu_custom_call.1} parent=11 // pred_check_branch
          %280 = sbr.rel (%p278) target = $region24
        $region23: #{tpu_custom_call.1} parent=11 // pred_region
          _
        $region24: #{tpu_custom_call.1} parent=11 // pred_fallthru
          _
        // Predicated region
        $region25: #{tpu_custom_call.1} parent=11 // pred_check
          %p281 = pneg %p158
        $region26: #{tpu_custom_call.1} parent=11 // pred_check_branch
          %283 = sbr.rel (%p281) target = $region28
        $region27: #{tpu_custom_call.1} parent=11 // pred_region
          _
        $region28: #{tpu_custom_call.1} parent=11 // pred_fallthru
          _
        // Predicated region
        $region29: #{tpu_custom_call.1} parent=11 // pred_check
          %p284 = pneg %p179
        $region30: #{tpu_custom_call.1} parent=11 // pred_check_branch
          %286 = sbr.rel (%p284) target = $region32
        $region31: #{tpu_custom_call.1} parent=11 // pred_region
          _
        $region32: #{tpu_custom_call.1} parent=11 // pred_fallthru
          _
      $region12: #{tpu_custom_call.1} parent=5 // pred_fallthru
        _
      %p287 = scmp.lt.s32.totalorder %s22, 2
      // Predicated region
      $region33: #{tpu_custom_call.1} parent=5 // pred_check
        %p288 = pneg %p287
      $region34: #{tpu_custom_call.1} parent=5 // pred_check_branch
        %290 = sbr.rel (%p288) target = $region36
      $region35: #{tpu_custom_call.1} parent=5 // pred_region
        // Predicated region
        $region37: #{tpu_custom_call.1} parent=35 // pred_check
          %p291 = pneg %p42
        $region38: #{tpu_custom_call.1} parent=35 // pred_check_branch
          %293 = sbr.rel (%p291) target = $region40
        $region39: #{tpu_custom_call.1} parent=35 // pred_region
          %s294 = smul.u32 8, %s22
          %p295 = scmp.lt.s32.totalorder %s294, 15
          %s296 = scalar_select %p295, %s294, 15
          %s297 = smul.addr %s296, 8
          %s298 = scalar_lea.vmem %s0, %s297
          %s299 = smul.u32 8, %s22
        $region40: #{tpu_custom_call.1} parent=35 // pred_fallthru
          _
        // Predicated region
        $region41: #{tpu_custom_call.1} parent=35 // pred_check
          %p300 = pneg %p89
        $region42: #{tpu_custom_call.1} parent=35 // pred_check_branch
          %302 = sbr.rel (%p300) target = $region44
        $region43: #{tpu_custom_call.1} parent=35 // pred_region
          %s303 = smul.u32 8, %s22
          %p304 = scmp.lt.s32.totalorder %s303, 15
          %s305 = scalar_select %p304, %s303, 15
          %s306 = smul.addr %s305, 8
          %s307 = scalar_lea.vmem %s2, %s306
          %s308 = smul.u32 8, %s22
        $region44: #{tpu_custom_call.1} parent=35 // pred_fallthru
          _
      $region36: #{tpu_custom_call.1} parent=5 // pred_fallthru
        _
      %p309 = scmp.le.s32.totalorder 1, %s22
      %p310 = scmp.lt.s32.totalorder %s22, 3
      %p311 = pnand %p309, %p310
      %p312 = pneg %p311
      // Predicated region
      $region45: #{tpu_custom_call.1} parent=5 // pred_check
        _
      $region46: #{tpu_custom_call.1} parent=5 // pred_check_branch
        %314 = sbr.rel (%p311) target = $region48
      $region47: #{tpu_custom_call.1} parent=5 // pred_region
        %s315 = ssub.s32 %s22, 1
        %s316 = smul.u32 8, %s27
        %p317 = scmp.lt.s32.totalorder %s316, 15
        %s318 = scalar_select %p317, %s316, 15
        %s319 = smul.addr %s318, 8
        %s320 = scalar_lea.vmem %s0, %s319
        %p321 = pneg %p48
        %p322 = pneg %p45
        %p323 = pneg %p69
        %p324 = pneg %p66
        %s325 = smul.u32 8, %s27
        %p326 = scmp.lt.s32.totalorder %s325, 15
        %s327 = scalar_select %p326, %s325, 15
        %s328 = smul.addr %s327, 8
        %s329 = scalar_lea.vmem %s2, %s328
        %p330 = pneg %p95
        %p331 = pneg %p92
        %p332 = pneg %p116
        %p333 = pneg %p113
        %p334 = pneg %p137
        %p335 = pneg %p134
        %p336 = pneg %p158
        %p337 = pneg %p155
        %p338 = pneg %p179
        %p339 = pneg %p176
        %p340 = pneg %p205
        %p341 = pneg %p202
        %s342 = smul.u32 8, %s27
        %p343 = scmp.lt.s32.totalorder %s342, 15
        %s344 = scalar_select %p343, %s342, 15
        %s345 = smul.addr %s344, 8
        %s346 = scalar_lea.vmem %s7, %s345
        %p347 = pneg %p231
        %p348 = pneg %p228
        %s349 = sand.u32 %s218, 1
        %s350 = scalar_lea.sflag [#allocation3], %s349
        %s351 = sand.u32 %s218, 1
        %s352 = smul.addr %s351, 64
        %s353 = scalar_lea.vmem [#allocation2], %s352
        %p354 = pneg %p257
        %p355 = pneg %p254
        %s356 = sand.u32 %s244, 1
        %s357 = scalar_lea.sflag [#allocation5], %s356
        %s358 = sand.u32 %s244, 1
        %s359 = smul.addr %s358, 64
        %s360 = scalar_lea.vmem [#allocation4], %s359
        %s361 = smul.u32 8, %s27
        %p362 = scmp.lt.s32.totalorder %s361, 15
        %s363 = scalar_select %p362, %s361, 15
        %s364 = smul.addr %s363, 8
        %s365 = scalar_lea.vmem %s0, %s364
        %s366 = smul.u32 8, %s27
        %s367 = smul.u32 8, %s27
        %p368 = scmp.lt.s32.totalorder %s367, 15
        %s369 = scalar_select %p368, %s367, 15
        %s370 = smul.addr %s369, 8
        %s371 = scalar_lea.vmem %s2, %s370
        %s372 = smul.u32 8, %s27
        %s373 = smul.u32 8, %s27
        %p374 = scmp.lt.s32.totalorder %s373, 15
        %s375 = scalar_select %p374, %s373, 15
        %s376 = smul.addr %s375, 8
        %s377 = scalar_lea.vmem %s7, %s376
        %s378 = smul.u32 8, %s27
        %s379 = smul.u32 8, %s27
        %s380 = smul.u32 8, %s27
        %v382 = vld [vmem:[%s365] sm:$0xff]
        %v383 = vld [vmem:[%s365 + $0x8] sm:$0xff]
        %v384 = vld [vmem:[%s365 + $0x10] sm:$0xff]
        %v385 = vld [vmem:[%s365 + $0x18] sm:$0xff]
        %v386 = vld [vmem:[%s365 + $0x20] sm:$0xff]
        %v387 = vld [vmem:[%s365 + $0x28] sm:$0xff]
        %v388 = vld [vmem:[%s365 + $0x30] sm:$0xff]
        %v389 = vld [vmem:[%s365 + $0x38] sm:$0xff]
        %v390 = vld [vmem:[%s1] sm:$0xff]
        %v391 = vld [vmem:[%s1 + $0x8] sm:$0xff]
        %v392 = vld [vmem:[%s1 + $0x10] sm:$0xff]
        %v393 = vld [vmem:[%s1 + $0x18] sm:$0xff]
        %v394 = vld [vmem:[%s1 + $0x20] sm:$0xff]
        %v395 = vld [vmem:[%s1 + $0x28] sm:$0xff]
        %v396 = vld [vmem:[%s1 + $0x30] sm:$0xff]
        %v397 = vld [vmem:[%s1 + $0x38] sm:$0xff]
        %v398 = vld [vmem:[%s1 + $0x40] sm:$0xff]
        %v399 = vld [vmem:[%s1 + $0x48] sm:$0xff]
        %v400 = vld [vmem:[%s1 + $0x50] sm:$0xff]
        %v401 = vld [vmem:[%s1 + $0x58] sm:$0xff]
        %v402 = vld [vmem:[%s1 + $0x60] sm:$0xff]
        %v403 = vld [vmem:[%s1 + $0x68] sm:$0xff]
        %v404 = vld [vmem:[%s1 + $0x70] sm:$0xff]
        %v405 = vld [vmem:[%s1 + $0x78] sm:$0xff]
        %vm406 = vcmask 130048
        %v408 = vsel %vm406, %v382, 0
        %v411 = vsel %vm406, %v383, 0
        %v414 = vsel %vm406, %v384, 0
        %v417 = vsel %vm406, %v385, 0
        %v420 = vsel %vm406, %v386, 0
        %v423 = vsel %vm406, %v387, 0
        %v426 = vsel %vm406, %v388, 0
        %v429 = vsel %vm406, %v389, 0
        %v432 = vsel %vm406, %v390, 0
        %v435 = vsel %vm406, %v391, 0
        %v438 = vsel %vm406, %v392, 0
        %v441 = vsel %vm406, %v393, 0
        %v444 = vsel %vm406, %v394, 0
        %v447 = vsel %vm406, %v395, 0
        %v450 = vsel %vm406, %v396, 0
        %v453 = vsel %vm406, %v397, 0
        %v456 = vsel %vm406, %v398, 0
        %v459 = vsel %vm406, %v399, 0
        %v462 = vsel %vm406, %v400, 0
        %v465 = vsel %vm406, %v401, 0
        %v468 = vsel %vm406, %v402, 0
        %v471 = vsel %vm406, %v403, 0
        %v474 = vsel %vm406, %v404, 0
        %v477 = vsel %vm406, %v405, 0
        %479 = vmatpush.xpose.msra.mxu0 %v477
        %480 = vmatpush.xpose.msra.mxu0 %v474
        %481 = vmatpush.xpose.msra.mxu0 %v471
        %482 = vmatpush.xpose.msra.mxu0 %v468
        %483 = vmatpush.xpose.msra.mxu0 %v465
        %484 = vmatpush.xpose.msra.mxu0 %v462
        %485 = vmatpush.xpose.msra.mxu0 %v459
        %486 = vmatpush.xpose.msra.mxu0 %v456
        %487 = vmatpush.xpose.msra.mxu0 %v453
        %488 = vmatpush.xpose.msra.mxu0 %v450
        %489 = vmatpush.xpose.msra.mxu0 %v447
        %490 = vmatpush.xpose.msra.mxu0 %v444
        %491 = vmatpush.xpose.msra.mxu0 %v441
        %492 = vmatpush.xpose.msra.mxu0 %v438
        %493 = vmatpush.xpose.msra.mxu0 %v435
        %494 = vmatpush.xpose.msra.mxu0 %v432
        %495 = vmatmul.f32.gmra.mxu0 %v408
        %v496 = vpop.f32.mrf.mxu0
        %v497 = vadd.f32 0.0, %v496
        %498 = vmatmul.f32.gmra.mxu0 %v411
        %v499 = vpop.f32.mrf.mxu0
        %v500 = vadd.f32 0.0, %v499
        %501 = vmatmul.f32.gmra.mxu0 %v414
        %v502 = vpop.f32.mrf.mxu0
        %v503 = vadd.f32 0.0, %v502
        %504 = vmatmul.f32.gmra.mxu0 %v417
        %v505 = vpop.f32.mrf.mxu0
        %v506 = vadd.f32 0.0, %v505
        %507 = vmatmul.f32.gmra.mxu0 %v420
        %v508 = vpop.f32.mrf.mxu0
        %v509 = vadd.f32 0.0, %v508
        %510 = vmatmul.f32.gmra.mxu0 %v423
        %v511 = vpop.f32.mrf.mxu0
        %v512 = vadd.f32 0.0, %v511
        %513 = vmatmul.f32.gmra.mxu0 %v426
        %v514 = vpop.f32.mrf.mxu0
        %v515 = vadd.f32 0.0, %v514
        %516 = vmatmul.f32.gmra.mxu0 %v429
        %v517 = vpop.f32.mrf.mxu0
        %v518 = vadd.f32 0.0, %v517
        %519 = vdwg.mxu0
        %v520 = vld [vmem:[%s371] sm:$0xff]
        %v521 = vld [vmem:[%s371 + $0x8] sm:$0xff]
        %v522 = vld [vmem:[%s371 + $0x10] sm:$0xff]
        %v523 = vld [vmem:[%s371 + $0x18] sm:$0xff]
        %v524 = vld [vmem:[%s371 + $0x20] sm:$0xff]
        %v525 = vld [vmem:[%s371 + $0x28] sm:$0xff]
        %v526 = vld [vmem:[%s371 + $0x30] sm:$0xff]
        %v527 = vld [vmem:[%s371 + $0x38] sm:$0xff]
        %v528 = vld [vmem:[%s3] sm:$0x1]
        %530 = vset.pattern.permute.xlu0 0
        %531 = vperm.xlu0 %530, %v520
        %v532 = vpop.permute.xlu0 %531
        %535 = vset.pattern.permute.xlu0 0
        %536 = vperm.xlu0 %535, %v521
        %v537 = vpop.permute.xlu0 %536
        %540 = vset.pattern.permute.xlu0 0
        %541 = vperm.xlu0 %540, %v522
        %v542 = vpop.permute.xlu0 %541
        %545 = vset.pattern.permute.xlu0 0
        %546 = vperm.xlu0 %545, %v523
        %v547 = vpop.permute.xlu0 %546
        %550 = vset.pattern.permute.xlu0 0
        %551 = vperm.xlu0 %550, %v524
        %v552 = vpop.permute.xlu0 %551
        %555 = vset.pattern.permute.xlu0 0
        %556 = vperm.xlu0 %555, %v525
        %v557 = vpop.permute.xlu0 %556
        %560 = vset.pattern.permute.xlu0 0
        %561 = vperm.xlu0 %560, %v526
        %v562 = vpop.permute.xlu0 %561
        %565 = vset.pattern.permute.xlu0 0
        %566 = vperm.xlu0 %565, %v527
        %v567 = vpop.permute.xlu0 %566
        %v570 = vperm.slane %v528, 0
        %v572 = vadd.f32 %v532, %v570
        %v573 = vadd.f32 %v537, %v570
        %v574 = vadd.f32 %v542, %v570
        %v575 = vadd.f32 %v547, %v570
        %v576 = vadd.f32 %v552, %v570
        %v577 = vadd.f32 %v557, %v570
        %v578 = vadd.f32 %v562, %v570
        %v579 = vadd.f32 %v567, %v570
        %v580 = vmul.f32 %v497, 2.0
        %v581 = vmul.f32 %v500, 2.0
        %v582 = vmul.f32 %v503, 2.0
        %v583 = vmul.f32 %v506, 2.0
        %v584 = vmul.f32 %v509, 2.0
        %v585 = vmul.f32 %v512, 2.0
        %v586 = vmul.f32 %v515, 2.0
        %v587 = vmul.f32 %v518, 2.0
        %v588 = vsub.f32 %v572, %v580
        %v589 = vsub.f32 %v573, %v581
        %v590 = vsub.f32 %v574, %v582
        %v591 = vsub.f32 %v575, %v583
        %v592 = vsub.f32 %v576, %v584
        %v593 = vsub.f32 %v577, %v585
        %v594 = vsub.f32 %v578, %v586
        %v595 = vsub.f32 %v579, %v587
        %s596 = smul.u32 %s27, 64
        %v597 = vlaneseq
        %v598 = vshrl.u32 %v597, 7
        %v599 = vadd.s32 %v598, 8
        %v600 = vadd.s32 %v598, 16
        %v601 = vadd.s32 %v598, 24
        %v602 = vadd.s32 %v598, 32
        %v603 = vadd.s32 %v598, 40
        %v604 = vadd.s32 %v598, 48
        %v605 = vadd.s32 %v598, 56
        %v606 = vstv %s596
        %v607 = vadd.s32 %v606, %v598
        %v608 = vadd.s32 %v606, %v599
        %v609 = vadd.s32 %v606, %v600
        %v610 = vadd.s32 %v606, %v601
        %v611 = vadd.s32 %v606, %v602
        %v612 = vadd.s32 %v606, %v603
        %v613 = vadd.s32 %v606, %v604
        %v614 = vadd.s32 %v606, %v605
        %v615 = vlaneseq
        %v616 = vand.u32 %v615, 127
        %vm617 = vcmp.eq.s32.totalorder %v616, %v607
        %vm618 = vcmp.eq.s32.totalorder %v616, %v608
        %vm619 = vcmp.eq.s32.totalorder %v616, %v609
        %vm620 = vcmp.eq.s32.totalorder %v616, %v610
        %vm621 = vcmp.eq.s32.totalorder %v616, %v611
        %vm622 = vcmp.eq.s32.totalorder %v616, %v612
        %vm623 = vcmp.eq.s32.totalorder %v616, %v613
        %vm624 = vcmp.eq.s32.totalorder %v616, %v614
        %vm625 = vcmp.ge.s32.totalorder %v616, 32
        %v626 = vsel %vm625, 1, 0
        %vm627 = vcmp.eq.s32.totalorder %v626, 1
        %vm628 = vmor %vm617, %vm627
        %vm629 = vmor %vm618, %vm627
        %vm630 = vmor %vm619, %vm627
        %vm631 = vmor %vm620, %vm627
        %vm632 = vmor %vm621, %vm627
        %vm633 = vmor %vm622, %vm627
        %vm634 = vmor %vm623, %vm627
        %vm635 = vmor %vm624, %vm627
        %v636 = vsel %vm628, inf, %v588
        %v637 = vsel %vm629, inf, %v589
        %v638 = vsel %vm630, inf, %v590
        %v639 = vsel %vm631, inf, %v591
        %v640 = vsel %vm632, inf, %v592
        %v641 = vsel %vm633, inf, %v593
        %v642 = vsel %vm634, inf, %v594
        %v643 = vsel %vm635, inf, %v595
        %644 = vmin.xlane.f32.xlu0 %v636
        %v645 = vpop.xlane.xlu0 %644
        %646 = vmin.xlane.f32.xlu0 %v637
        %v647 = vpop.xlane.xlu0 %646
        %648 = vmin.xlane.f32.xlu0 %v638
        %v649 = vpop.xlane.xlu0 %648
        %650 = vmin.xlane.f32.xlu0 %v639
        %v651 = vpop.xlane.xlu0 %650
        %652 = vmin.xlane.f32.xlu0 %v640
        %v653 = vpop.xlane.xlu0 %652
        %654 = vmin.xlane.f32.xlu0 %v641
        %v655 = vpop.xlane.xlu0 %654
        %656 = vmin.xlane.f32.xlu0 %v642
        %v657 = vpop.xlane.xlu0 %656
        %658 = vmin.xlane.f32.xlu0 %v643
        %v659 = vpop.xlane.xlu0 %658
        %vm660 = vcmp.le.f32.partialorder %v636, %v645
        %vm661 = vcmp.le.f32.partialorder %v637, %v647
        %vm662 = vcmp.le.f32.partialorder %v638, %v649
        %vm663 = vcmp.le.f32.partialorder %v639, %v651
        %vm664 = vcmp.le.f32.partialorder %v640, %v653
        %vm665 = vcmp.le.f32.partialorder %v641, %v655
        %vm666 = vcmp.le.f32.partialorder %v642, %v657
        %vm667 = vcmp.le.f32.partialorder %v643, %v659
        %v668 = vsel %vm660, %v616, 128
        %v669 = vsel %vm661, %v616, 128
        %v670 = vsel %vm662, %v616, 128
        %v671 = vsel %vm663, %v616, 128
        %v672 = vsel %vm664, %v616, 128
        %v673 = vsel %vm665, %v616, 128
        %v674 = vsel %vm666, %v616, 128
        %v675 = vsel %vm667, %v616, 128
        %v676 = vand.u32 %v668, 65535
        %v677 = vshra.s32 %v668, 16
        %v678 = vcvt.s32.f32 %v676
        %v679 = vcvt.s32.f32 %v677
        %680 = vmin.xlane.f32.xlu0 %v679
        %v681 = vpop.xlane.xlu0 %680
        %vm682 = vcmp.eq.f32.partialorder %v679, %v681
        %v683 = vsel %vm682, %v678, inf
        %684 = vmin.xlane.f32.xlu0 %v683
        %v685 = vpop.xlane.xlu0 %684
        %v686 = vcvt.f32.s32 %v685
        %v687 = vcvt.f32.s32 %v681
        %v688 = vshll.u32 %v687, 16
        %v689 = vadd.s32 %v688, %v686
        %v690 = vand.u32 %v669, 65535
        %v691 = vshra.s32 %v669, 16
        %v692 = vcvt.s32.f32 %v690
        %v693 = vcvt.s32.f32 %v691
        %694 = vmin.xlane.f32.xlu0 %v693
        %v695 = vpop.xlane.xlu0 %694
        %vm696 = vcmp.eq.f32.partialorder %v693, %v695
        %v697 = vsel %vm696, %v692, inf
        %698 = vmin.xlane.f32.xlu0 %v697
        %v699 = vpop.xlane.xlu0 %698
        %v700 = vcvt.f32.s32 %v699
        %v701 = vcvt.f32.s32 %v695
        %v702 = vshll.u32 %v701, 16
        %v703 = vadd.s32 %v702, %v700
        %v704 = vand.u32 %v670, 65535
        %v705 = vshra.s32 %v670, 16
        %v706 = vcvt.s32.f32 %v704
        %v707 = vcvt.s32.f32 %v705
        %708 = vmin.xlane.f32.xlu0 %v707
        %v709 = vpop.xlane.xlu0 %708
        %vm710 = vcmp.eq.f32.partialorder %v707, %v709
        %v711 = vsel %vm710, %v706, inf
        %712 = vmin.xlane.f32.xlu0 %v711
        %v713 = vpop.xlane.xlu0 %712
        %v714 = vcvt.f32.s32 %v713
        %v715 = vcvt.f32.s32 %v709
        %v716 = vshll.u32 %v715, 16
        %v717 = vadd.s32 %v716, %v714
        %v718 = vand.u32 %v671, 65535
        %v719 = vshra.s32 %v671, 16
        %v720 = vcvt.s32.f32 %v718
        %v721 = vcvt.s32.f32 %v719
        %722 = vmin.xlane.f32.xlu0 %v721
        %v723 = vpop.xlane.xlu0 %722
        %vm724 = vcmp.eq.f32.partialorder %v721, %v723
        %v725 = vsel %vm724, %v720, inf
        %726 = vmin.xlane.f32.xlu0 %v725
        %v727 = vpop.xlane.xlu0 %726
        %v728 = vcvt.f32.s32 %v727
        %v729 = vcvt.f32.s32 %v723
        %v730 = vshll.u32 %v729, 16
        %v731 = vadd.s32 %v730, %v728
        %v732 = vand.u32 %v672, 65535
        %v733 = vshra.s32 %v672, 16
        %v734 = vcvt.s32.f32 %v732
        %v735 = vcvt.s32.f32 %v733
        %736 = vmin.xlane.f32.xlu0 %v735
        %v737 = vpop.xlane.xlu0 %736
        %vm738 = vcmp.eq.f32.partialorder %v735, %v737
        %v739 = vsel %vm738, %v734, inf
        %740 = vmin.xlane.f32.xlu0 %v739
        %v741 = vpop.xlane.xlu0 %740
        %v742 = vcvt.f32.s32 %v741
        %v743 = vcvt.f32.s32 %v737
        %v744 = vshll.u32 %v743, 16
        %v745 = vadd.s32 %v744, %v742
        %v746 = vand.u32 %v673, 65535
        %v747 = vshra.s32 %v673, 16
        %v748 = vcvt.s32.f32 %v746
        %v749 = vcvt.s32.f32 %v747
        %750 = vmin.xlane.f32.xlu0 %v749
        %v751 = vpop.xlane.xlu0 %750
        %vm752 = vcmp.eq.f32.partialorder %v749, %v751
        %v753 = vsel %vm752, %v748, inf
        %754 = vmin.xlane.f32.xlu0 %v753
        %v755 = vpop.xlane.xlu0 %754
        %v756 = vcvt.f32.s32 %v755
        %v757 = vcvt.f32.s32 %v751
        %v758 = vshll.u32 %v757, 16
        %v759 = vadd.s32 %v758, %v756
        %v760 = vand.u32 %v674, 65535
        %v761 = vshra.s32 %v674, 16
        %v762 = vcvt.s32.f32 %v760
        %v763 = vcvt.s32.f32 %v761
        %764 = vmin.xlane.f32.xlu0 %v763
        %v765 = vpop.xlane.xlu0 %764
        %vm766 = vcmp.eq.f32.partialorder %v763, %v765
        %v767 = vsel %vm766, %v762, inf
        %768 = vmin.xlane.f32.xlu0 %v767
        %v769 = vpop.xlane.xlu0 %768
        %v770 = vcvt.f32.s32 %v769
        %v771 = vcvt.f32.s32 %v765
        %v772 = vshll.u32 %v771, 16
        %v773 = vadd.s32 %v772, %v770
        %v774 = vand.u32 %v675, 65535
        %v775 = vshra.s32 %v675, 16
        %v776 = vcvt.s32.f32 %v774
        %v777 = vcvt.s32.f32 %v775
        %778 = vmin.xlane.f32.xlu0 %v777
        %v779 = vpop.xlane.xlu0 %778
        %vm780 = vcmp.eq.f32.partialorder %v777, %v779
        %v781 = vsel %vm780, %v776, inf
        %782 = vmin.xlane.f32.xlu0 %v781
        %v783 = vpop.xlane.xlu0 %782
        %v784 = vcvt.f32.s32 %v783
        %v785 = vcvt.f32.s32 %v779
        %v786 = vshll.u32 %v785, 16
        %v787 = vadd.s32 %v786, %v784
        %vm788 = vcmp.eq.s32.totalorder %v616, %v689
        %vm789 = vcmp.eq.s32.totalorder %v616, %v703
        %vm790 = vcmp.eq.s32.totalorder %v616, %v717
        %vm791 = vcmp.eq.s32.totalorder %v616, %v731
        %vm792 = vcmp.eq.s32.totalorder %v616, %v745
        %vm793 = vcmp.eq.s32.totalorder %v616, %v759
        %vm794 = vcmp.eq.s32.totalorder %v616, %v773
        %vm795 = vcmp.eq.s32.totalorder %v616, %v787
        %v796 = vsel %vm788, inf, %v636
        %v797 = vsel %vm789, inf, %v637
        %v798 = vsel %vm790, inf, %v638
        %v799 = vsel %vm791, inf, %v639
        %v800 = vsel %vm792, inf, %v640
        %v801 = vsel %vm793, inf, %v641
        %v802 = vsel %vm794, inf, %v642
        %v803 = vsel %vm795, inf, %v643
        %804 = vmin.xlane.f32.xlu0 %v796
        %v805 = vpop.xlane.xlu0 %804
        %806 = vmin.xlane.f32.xlu0 %v797
        %v807 = vpop.xlane.xlu0 %806
        %808 = vmin.xlane.f32.xlu0 %v798
        %v809 = vpop.xlane.xlu0 %808
        %810 = vmin.xlane.f32.xlu0 %v799
        %v811 = vpop.xlane.xlu0 %810
        %812 = vmin.xlane.f32.xlu0 %v800
        %v813 = vpop.xlane.xlu0 %812
        %814 = vmin.xlane.f32.xlu0 %v801
        %v815 = vpop.xlane.xlu0 %814
        %816 = vmin.xlane.f32.xlu0 %v802
        %v817 = vpop.xlane.xlu0 %816
        %818 = vmin.xlane.f32.xlu0 %v803
        %v819 = vpop.xlane.xlu0 %818
        %vm820 = vcmp.le.f32.partialorder %v796, %v805
        %vm821 = vcmp.le.f32.partialorder %v797, %v807
        %vm822 = vcmp.le.f32.partialorder %v798, %v809
        %vm823 = vcmp.le.f32.partialorder %v799, %v811
        %vm824 = vcmp.le.f32.partialorder %v800, %v813
        %vm825 = vcmp.le.f32.partialorder %v801, %v815
        %vm826 = vcmp.le.f32.partialorder %v802, %v817
        %vm827 = vcmp.le.f32.partialorder %v803, %v819
        %v828 = vsel %vm820, %v616, 128
        %v829 = vsel %vm821, %v616, 128
        %v830 = vsel %vm822, %v616, 128
        %v831 = vsel %vm823, %v616, 128
        %v832 = vsel %vm824, %v616, 128
        %v833 = vsel %vm825, %v616, 128
        %v834 = vsel %vm826, %v616, 128
        %v835 = vsel %vm827, %v616, 128
        %v836 = vand.u32 %v828, 65535
        %v837 = vshra.s32 %v828, 16
        %v838 = vcvt.s32.f32 %v836
        %v839 = vcvt.s32.f32 %v837
        %840 = vmin.xlane.f32.xlu0 %v839
        %v841 = vpop.xlane.xlu0 %840
        %vm842 = vcmp.eq.f32.partialorder %v839, %v841
        %v843 = vsel %vm842, %v838, inf
        %844 = vmin.xlane.f32.xlu0 %v843
        %v845 = vpop.xlane.xlu0 %844
        %v846 = vcvt.f32.s32 %v845
        %v847 = vcvt.f32.s32 %v841
        %v848 = vshll.u32 %v847, 16
        %v849 = vadd.s32 %v848, %v846
        %v850 = vand.u32 %v829, 65535
        %v851 = vshra.s32 %v829, 16
        %v852 = vcvt.s32.f32 %v850
        %v853 = vcvt.s32.f32 %v851
        %854 = vmin.xlane.f32.xlu0 %v853
        %v855 = vpop.xlane.xlu0 %854
        %vm856 = vcmp.eq.f32.partialorder %v853, %v855
        %v857 = vsel %vm856, %v852, inf
        %858 = vmin.xlane.f32.xlu0 %v857
        %v859 = vpop.xlane.xlu0 %858
        %v860 = vcvt.f32.s32 %v859
        %v861 = vcvt.f32.s32 %v855
        %v862 = vshll.u32 %v861, 16
        %v863 = vadd.s32 %v862, %v860
        %v864 = vand.u32 %v830, 65535
        %v865 = vshra.s32 %v830, 16
        %v866 = vcvt.s32.f32 %v864
        %v867 = vcvt.s32.f32 %v865
        %868 = vmin.xlane.f32.xlu0 %v867
        %v869 = vpop.xlane.xlu0 %868
        %vm870 = vcmp.eq.f32.partialorder %v867, %v869
        %v871 = vsel %vm870, %v866, inf
        %872 = vmin.xlane.f32.xlu0 %v871
        %v873 = vpop.xlane.xlu0 %872
        %v874 = vcvt.f32.s32 %v873
        %v875 = vcvt.f32.s32 %v869
        %v876 = vshll.u32 %v875, 16
        %v877 = vadd.s32 %v876, %v874
        %v878 = vand.u32 %v831, 65535
        %v879 = vshra.s32 %v831, 16
        %v880 = vcvt.s32.f32 %v878
        %v881 = vcvt.s32.f32 %v879
        %882 = vmin.xlane.f32.xlu0 %v881
        %v883 = vpop.xlane.xlu0 %882
        %vm884 = vcmp.eq.f32.partialorder %v881, %v883
        %v885 = vsel %vm884, %v880, inf
        %886 = vmin.xlane.f32.xlu0 %v885
        %v887 = vpop.xlane.xlu0 %886
        %v888 = vcvt.f32.s32 %v887
        %v889 = vcvt.f32.s32 %v883
        %v890 = vshll.u32 %v889, 16
        %v891 = vadd.s32 %v890, %v888
        %v892 = vand.u32 %v832, 65535
        %v893 = vshra.s32 %v832, 16
        %v894 = vcvt.s32.f32 %v892
        %v895 = vcvt.s32.f32 %v893
        %896 = vmin.xlane.f32.xlu0 %v895
        %v897 = vpop.xlane.xlu0 %896
        %vm898 = vcmp.eq.f32.partialorder %v895, %v897
        %v899 = vsel %vm898, %v894, inf
        %900 = vmin.xlane.f32.xlu0 %v899
        %v901 = vpop.xlane.xlu0 %900
        %v902 = vcvt.f32.s32 %v901
        %v903 = vcvt.f32.s32 %v897
        %v904 = vshll.u32 %v903, 16
        %v905 = vadd.s32 %v904, %v902
        %v906 = vand.u32 %v833, 65535
        %v907 = vshra.s32 %v833, 16
        %v908 = vcvt.s32.f32 %v906
        %v909 = vcvt.s32.f32 %v907
        %910 = vmin.xlane.f32.xlu0 %v909
        %v911 = vpop.xlane.xlu0 %910
        %vm912 = vcmp.eq.f32.partialorder %v909, %v911
        %v913 = vsel %vm912, %v908, inf
        %914 = vmin.xlane.f32.xlu0 %v913
        %v915 = vpop.xlane.xlu0 %914
        %v916 = vcvt.f32.s32 %v915
        %v917 = vcvt.f32.s32 %v911
        %v918 = vshll.u32 %v917, 16
        %v919 = vadd.s32 %v918, %v916
        %v920 = vand.u32 %v834, 65535
        %v921 = vshra.s32 %v834, 16
        %v922 = vcvt.s32.f32 %v920
        %v923 = vcvt.s32.f32 %v921
        %924 = vmin.xlane.f32.xlu0 %v923
        %v925 = vpop.xlane.xlu0 %924
        %vm926 = vcmp.eq.f32.partialorder %v923, %v925
        %v927 = vsel %vm926, %v922, inf
        %928 = vmin.xlane.f32.xlu0 %v927
        %v929 = vpop.xlane.xlu0 %928
        %v930 = vcvt.f32.s32 %v929
        %v931 = vcvt.f32.s32 %v925
        %v932 = vshll.u32 %v931, 16
        %v933 = vadd.s32 %v932, %v930
        %v934 = vand.u32 %v835, 65535
        %v935 = vshra.s32 %v835, 16
        %v936 = vcvt.s32.f32 %v934
        %v937 = vcvt.s32.f32 %v935
        %938 = vmin.xlane.f32.xlu0 %v937
        %v939 = vpop.xlane.xlu0 %938
        %vm940 = vcmp.eq.f32.partialorder %v937, %v939
        %v941 = vsel %vm940, %v936, inf
        %942 = vmin.xlane.f32.xlu0 %v941
        %v943 = vpop.xlane.xlu0 %942
        %v944 = vcvt.f32.s32 %v943
        %v945 = vcvt.f32.s32 %v939
        %v946 = vshll.u32 %v945, 16
        %v947 = vadd.s32 %v946, %v944
        %vm948 = vcmp.eq.s32.totalorder %v616, %v849
        %vm949 = vcmp.eq.s32.totalorder %v616, %v863
        %vm950 = vcmp.eq.s32.totalorder %v616, %v877
        %vm951 = vcmp.eq.s32.totalorder %v616, %v891
        %vm952 = vcmp.eq.s32.totalorder %v616, %v905
        %vm953 = vcmp.eq.s32.totalorder %v616, %v919
        %vm954 = vcmp.eq.s32.totalorder %v616, %v933
        %vm955 = vcmp.eq.s32.totalorder %v616, %v947
        %v956 = vsel %vm948, inf, %v796
        %v957 = vsel %vm949, inf, %v797
        %v958 = vsel %vm950, inf, %v798
        %v959 = vsel %vm951, inf, %v799
        %v960 = vsel %vm952, inf, %v800
        %v961 = vsel %vm953, inf, %v801
        %v962 = vsel %vm954, inf, %v802
        %v963 = vsel %vm955, inf, %v803
        %964 = vmin.xlane.f32.xlu0 %v956
        %v965 = vpop.xlane.xlu0 %964
        %966 = vmin.xlane.f32.xlu0 %v957
        %v967 = vpop.xlane.xlu0 %966
        %968 = vmin.xlane.f32.xlu0 %v958
        %v969 = vpop.xlane.xlu0 %968
        %970 = vmin.xlane.f32.xlu0 %v959
        %v971 = vpop.xlane.xlu0 %970
        %972 = vmin.xlane.f32.xlu0 %v960
        %v973 = vpop.xlane.xlu0 %972
        %974 = vmin.xlane.f32.xlu0 %v961
        %v975 = vpop.xlane.xlu0 %974
        %976 = vmin.xlane.f32.xlu0 %v962
        %v977 = vpop.xlane.xlu0 %976
        %978 = vmin.xlane.f32.xlu0 %v963
        %v979 = vpop.xlane.xlu0 %978
        %vm980 = vcmp.le.f32.partialorder %v956, %v965
        %vm981 = vcmp.le.f32.partialorder %v957, %v967
        %vm982 = vcmp.le.f32.partialorder %v958, %v969
        %vm983 = vcmp.le.f32.partialorder %v959, %v971
        %vm984 = vcmp.le.f32.partialorder %v960, %v973
        %vm985 = vcmp.le.f32.partialorder %v961, %v975
        %vm986 = vcmp.le.f32.partialorder %v962, %v977
        %vm987 = vcmp.le.f32.partialorder %v963, %v979
        %v988 = vsel %vm980, %v616, 128
        %v989 = vsel %vm981, %v616, 128
        %v990 = vsel %vm982, %v616, 128
        %v991 = vsel %vm983, %v616, 128
        %v992 = vsel %vm984, %v616, 128
        %v993 = vsel %vm985, %v616, 128
        %v994 = vsel %vm986, %v616, 128
        %v995 = vsel %vm987, %v616, 128
        %v996 = vand.u32 %v988, 65535
        %v997 = vshra.s32 %v988, 16
        %v998 = vcvt.s32.f32 %v996
        %v999 = vcvt.s32.f32 %v997
        %1000 = vmin.xlane.f32.xlu0 %v999
        %v1001 = vpop.xlane.xlu0 %1000
        %vm1002 = vcmp.eq.f32.partialorder %v999, %v1001
        %v1003 = vsel %vm1002, %v998, inf
        %1004 = vmin.xlane.f32.xlu0 %v1003
        %v1005 = vpop.xlane.xlu0 %1004
        %v1006 = vcvt.f32.s32 %v1005
        %v1007 = vcvt.f32.s32 %v1001
        %v1008 = vshll.u32 %v1007, 16
        %v1009 = vadd.s32 %v1008, %v1006
        %v1010 = vand.u32 %v989, 65535
        %v1011 = vshra.s32 %v989, 16
        %v1012 = vcvt.s32.f32 %v1010
        %v1013 = vcvt.s32.f32 %v1011
        %1014 = vmin.xlane.f32.xlu0 %v1013
        %v1015 = vpop.xlane.xlu0 %1014
        %vm1016 = vcmp.eq.f32.partialorder %v1013, %v1015
        %v1017 = vsel %vm1016, %v1012, inf
        %1018 = vmin.xlane.f32.xlu0 %v1017
        %v1019 = vpop.xlane.xlu0 %1018
        %v1020 = vcvt.f32.s32 %v1019
        %v1021 = vcvt.f32.s32 %v1015
        %v1022 = vshll.u32 %v1021, 16
        %v1023 = vadd.s32 %v1022, %v1020
        %v1024 = vand.u32 %v990, 65535
        %v1025 = vshra.s32 %v990, 16
        %v1026 = vcvt.s32.f32 %v1024
        %v1027 = vcvt.s32.f32 %v1025
        %1028 = vmin.xlane.f32.xlu0 %v1027
        %v1029 = vpop.xlane.xlu0 %1028
        %vm1030 = vcmp.eq.f32.partialorder %v1027, %v1029
        %v1031 = vsel %vm1030, %v1026, inf
        %1032 = vmin.xlane.f32.xlu0 %v1031
        %v1033 = vpop.xlane.xlu0 %1032
        %v1034 = vcvt.f32.s32 %v1033
        %v1035 = vcvt.f32.s32 %v1029
        %v1036 = vshll.u32 %v1035, 16
        %v1037 = vadd.s32 %v1036, %v1034
        %v1038 = vand.u32 %v991, 65535
        %v1039 = vshra.s32 %v991, 16
        %v1040 = vcvt.s32.f32 %v1038
        %v1041 = vcvt.s32.f32 %v1039
        %1042 = vmin.xlane.f32.xlu0 %v1041
        %v1043 = vpop.xlane.xlu0 %1042
        %vm1044 = vcmp.eq.f32.partialorder %v1041, %v1043
        %v1045 = vsel %vm1044, %v1040, inf
        %1046 = vmin.xlane.f32.xlu0 %v1045
        %v1047 = vpop.xlane.xlu0 %1046
        %v1048 = vcvt.f32.s32 %v1047
        %v1049 = vcvt.f32.s32 %v1043
        %v1050 = vshll.u32 %v1049, 16
        %v1051 = vadd.s32 %v1050, %v1048
        %v1052 = vand.u32 %v992, 65535
        %v1053 = vshra.s32 %v992, 16
        %v1054 = vcvt.s32.f32 %v1052
        %v1055 = vcvt.s32.f32 %v1053
        %1056 = vmin.xlane.f32.xlu0 %v1055
        %v1057 = vpop.xlane.xlu0 %1056
        %vm1058 = vcmp.eq.f32.partialorder %v1055, %v1057
        %v1059 = vsel %vm1058, %v1054, inf
        %1060 = vmin.xlane.f32.xlu0 %v1059
        %v1061 = vpop.xlane.xlu0 %1060
        %v1062 = vcvt.f32.s32 %v1061
        %v1063 = vcvt.f32.s32 %v1057
        %v1064 = vshll.u32 %v1063, 16
        %v1065 = vadd.s32 %v1064, %v1062
        %v1066 = vand.u32 %v993, 65535
        %v1067 = vshra.s32 %v993, 16
        %v1068 = vcvt.s32.f32 %v1066
        %v1069 = vcvt.s32.f32 %v1067
        %1070 = vmin.xlane.f32.xlu0 %v1069
        %v1071 = vpop.xlane.xlu0 %1070
        %vm1072 = vcmp.eq.f32.partialorder %v1069, %v1071
        %v1073 = vsel %vm1072, %v1068, inf
        %1074 = vmin.xlane.f32.xlu0 %v1073
        %v1075 = vpop.xlane.xlu0 %1074
        %v1076 = vcvt.f32.s32 %v1075
        %v1077 = vcvt.f32.s32 %v1071
        %v1078 = vshll.u32 %v1077, 16
        %v1079 = vadd.s32 %v1078, %v1076
        %v1080 = vand.u32 %v994, 65535
        %v1081 = vshra.s32 %v994, 16
        %v1082 = vcvt.s32.f32 %v1080
        %v1083 = vcvt.s32.f32 %v1081
        %1084 = vmin.xlane.f32.xlu0 %v1083
        %v1085 = vpop.xlane.xlu0 %1084
        %vm1086 = vcmp.eq.f32.partialorder %v1083, %v1085
        %v1087 = vsel %vm1086, %v1082, inf
        %1088 = vmin.xlane.f32.xlu0 %v1087
        %v1089 = vpop.xlane.xlu0 %1088
        %v1090 = vcvt.f32.s32 %v1089
        %v1091 = vcvt.f32.s32 %v1085
        %v1092 = vshll.u32 %v1091, 16
        %v1093 = vadd.s32 %v1092, %v1090
        %v1094 = vand.u32 %v995, 65535
        %v1095 = vshra.s32 %v995, 16
        %v1096 = vcvt.s32.f32 %v1094
        %v1097 = vcvt.s32.f32 %v1095
        %1098 = vmin.xlane.f32.xlu0 %v1097
        %v1099 = vpop.xlane.xlu0 %1098
        %vm1100 = vcmp.eq.f32.partialorder %v1097, %v1099
        %v1101 = vsel %vm1100, %v1096, inf
        %1102 = vmin.xlane.f32.xlu0 %v1101
        %v1103 = vpop.xlane.xlu0 %1102
        %v1104 = vcvt.f32.s32 %v1103
        %v1105 = vcvt.f32.s32 %v1099
        %v1106 = vshll.u32 %v1105, 16
        %v1107 = vadd.s32 %v1106, %v1104
        %vm1108 = vcmp.eq.s32.totalorder %v616, %v1009
        %vm1109 = vcmp.eq.s32.totalorder %v616, %v1023
        %vm1110 = vcmp.eq.s32.totalorder %v616, %v1037
        %vm1111 = vcmp.eq.s32.totalorder %v616, %v1051
        %vm1112 = vcmp.eq.s32.totalorder %v616, %v1065
        %vm1113 = vcmp.eq.s32.totalorder %v616, %v1079
        %vm1114 = vcmp.eq.s32.totalorder %v616, %v1093
        %vm1115 = vcmp.eq.s32.totalorder %v616, %v1107
        %v1116 = vsel %vm1108, inf, %v956
        %v1117 = vsel %vm1109, inf, %v957
        %v1118 = vsel %vm1110, inf, %v958
        %v1119 = vsel %vm1111, inf, %v959
        %v1120 = vsel %vm1112, inf, %v960
        %v1121 = vsel %vm1113, inf, %v961
        %v1122 = vsel %vm1114, inf, %v962
        %v1123 = vsel %vm1115, inf, %v963
        %1124 = vmin.xlane.f32.xlu0 %v1116
        %v1125 = vpop.xlane.xlu0 %1124
        %1126 = vmin.xlane.f32.xlu0 %v1117
        %v1127 = vpop.xlane.xlu0 %1126
        %1128 = vmin.xlane.f32.xlu0 %v1118
        %v1129 = vpop.xlane.xlu0 %1128
        %1130 = vmin.xlane.f32.xlu0 %v1119
        %v1131 = vpop.xlane.xlu0 %1130
        %1132 = vmin.xlane.f32.xlu0 %v1120
        %v1133 = vpop.xlane.xlu0 %1132
        %1134 = vmin.xlane.f32.xlu0 %v1121
        %v1135 = vpop.xlane.xlu0 %1134
        %1136 = vmin.xlane.f32.xlu0 %v1122
        %v1137 = vpop.xlane.xlu0 %1136
        %1138 = vmin.xlane.f32.xlu0 %v1123
        %v1139 = vpop.xlane.xlu0 %1138
        %vm1140 = vcmp.le.f32.partialorder %v1116, %v1125
        %vm1141 = vcmp.le.f32.partialorder %v1117, %v1127
        %vm1142 = vcmp.le.f32.partialorder %v1118, %v1129
        %vm1143 = vcmp.le.f32.partialorder %v1119, %v1131
        %vm1144 = vcmp.le.f32.partialorder %v1120, %v1133
        %vm1145 = vcmp.le.f32.partialorder %v1121, %v1135
        %vm1146 = vcmp.le.f32.partialorder %v1122, %v1137
        %vm1147 = vcmp.le.f32.partialorder %v1123, %v1139
        %v1148 = vsel %vm1140, %v616, 128
        %v1149 = vsel %vm1141, %v616, 128
        %v1150 = vsel %vm1142, %v616, 128
        %v1151 = vsel %vm1143, %v616, 128
        %v1152 = vsel %vm1144, %v616, 128
        %v1153 = vsel %vm1145, %v616, 128
        %v1154 = vsel %vm1146, %v616, 128
        %v1155 = vsel %vm1147, %v616, 128
        %v1156 = vand.u32 %v1148, 65535
        %v1157 = vshra.s32 %v1148, 16
        %v1158 = vcvt.s32.f32 %v1156
        %v1159 = vcvt.s32.f32 %v1157
        %1160 = vmin.xlane.f32.xlu0 %v1159
        %v1161 = vpop.xlane.xlu0 %1160
        %vm1162 = vcmp.eq.f32.partialorder %v1159, %v1161
        %v1163 = vsel %vm1162, %v1158, inf
        %1164 = vmin.xlane.f32.xlu0 %v1163
        %v1165 = vpop.xlane.xlu0 %1164
        %v1166 = vcvt.f32.s32 %v1165
        %v1167 = vcvt.f32.s32 %v1161
        %v1168 = vshll.u32 %v1167, 16
        %v1169 = vadd.s32 %v1168, %v1166
        %v1170 = vand.u32 %v1149, 65535
        %v1171 = vshra.s32 %v1149, 16
        %v1172 = vcvt.s32.f32 %v1170
        %v1173 = vcvt.s32.f32 %v1171
        %1174 = vmin.xlane.f32.xlu0 %v1173
        %v1175 = vpop.xlane.xlu0 %1174
        %vm1176 = vcmp.eq.f32.partialorder %v1173, %v1175
        %v1177 = vsel %vm1176, %v1172, inf
        %1178 = vmin.xlane.f32.xlu0 %v1177
        %v1179 = vpop.xlane.xlu0 %1178
        %v1180 = vcvt.f32.s32 %v1179
        %v1181 = vcvt.f32.s32 %v1175
        %v1182 = vshll.u32 %v1181, 16
        %v1183 = vadd.s32 %v1182, %v1180
        %v1184 = vand.u32 %v1150, 65535
        %v1185 = vshra.s32 %v1150, 16
        %v1186 = vcvt.s32.f32 %v1184
        %v1187 = vcvt.s32.f32 %v1185
        %1188 = vmin.xlane.f32.xlu0 %v1187
        %v1189 = vpop.xlane.xlu0 %1188
        %vm1190 = vcmp.eq.f32.partialorder %v1187, %v1189
        %v1191 = vsel %vm1190, %v1186, inf
        %1192 = vmin.xlane.f32.xlu0 %v1191
        %v1193 = vpop.xlane.xlu0 %1192
        %v1194 = vcvt.f32.s32 %v1193
        %v1195 = vcvt.f32.s32 %v1189
        %v1196 = vshll.u32 %v1195, 16
        %v1197 = vadd.s32 %v1196, %v1194
        %v1198 = vand.u32 %v1151, 65535
        %v1199 = vshra.s32 %v1151, 16
        %v1200 = vcvt.s32.f32 %v1198
        %v1201 = vcvt.s32.f32 %v1199
        %1202 = vmin.xlane.f32.xlu0 %v1201
        %v1203 = vpop.xlane.xlu0 %1202
        %vm1204 = vcmp.eq.f32.partialorder %v1201, %v1203
        %v1205 = vsel %vm1204, %v1200, inf
        %1206 = vmin.xlane.f32.xlu0 %v1205
        %v1207 = vpop.xlane.xlu0 %1206
        %v1208 = vcvt.f32.s32 %v1207
        %v1209 = vcvt.f32.s32 %v1203
        %v1210 = vshll.u32 %v1209, 16
        %v1211 = vadd.s32 %v1210, %v1208
        %v1212 = vand.u32 %v1152, 65535
        %v1213 = vshra.s32 %v1152, 16
        %v1214 = vcvt.s32.f32 %v1212
        %v1215 = vcvt.s32.f32 %v1213
        %1216 = vmin.xlane.f32.xlu0 %v1215
        %v1217 = vpop.xlane.xlu0 %1216
        %vm1218 = vcmp.eq.f32.partialorder %v1215, %v1217
        %v1219 = vsel %vm1218, %v1214, inf
        %1220 = vmin.xlane.f32.xlu0 %v1219
        %v1221 = vpop.xlane.xlu0 %1220
        %v1222 = vcvt.f32.s32 %v1221
        %v1223 = vcvt.f32.s32 %v1217
        %v1224 = vshll.u32 %v1223, 16
        %v1225 = vadd.s32 %v1224, %v1222
        %v1226 = vand.u32 %v1153, 65535
        %v1227 = vshra.s32 %v1153, 16
        %v1228 = vcvt.s32.f32 %v1226
        %v1229 = vcvt.s32.f32 %v1227
        %1230 = vmin.xlane.f32.xlu0 %v1229
        %v1231 = vpop.xlane.xlu0 %1230
        %vm1232 = vcmp.eq.f32.partialorder %v1229, %v1231
        %v1233 = vsel %vm1232, %v1228, inf
        %1234 = vmin.xlane.f32.xlu0 %v1233
        %v1235 = vpop.xlane.xlu0 %1234
        %v1236 = vcvt.f32.s32 %v1235
        %v1237 = vcvt.f32.s32 %v1231
        %v1238 = vshll.u32 %v1237, 16
        %v1239 = vadd.s32 %v1238, %v1236
        %v1240 = vand.u32 %v1154, 65535
        %v1241 = vshra.s32 %v1154, 16
        %v1242 = vcvt.s32.f32 %v1240
        %v1243 = vcvt.s32.f32 %v1241
        %1244 = vmin.xlane.f32.xlu0 %v1243
        %v1245 = vpop.xlane.xlu0 %1244
        %vm1246 = vcmp.eq.f32.partialorder %v1243, %v1245
        %v1247 = vsel %vm1246, %v1242, inf
        %1248 = vmin.xlane.f32.xlu0 %v1247
        %v1249 = vpop.xlane.xlu0 %1248
        %v1250 = vcvt.f32.s32 %v1249
        %v1251 = vcvt.f32.s32 %v1245
        %v1252 = vshll.u32 %v1251, 16
        %v1253 = vadd.s32 %v1252, %v1250
        %v1254 = vand.u32 %v1155, 65535
        %v1255 = vshra.s32 %v1155, 16
        %v1256 = vcvt.s32.f32 %v1254
        %v1257 = vcvt.s32.f32 %v1255
        %1258 = vmin.xlane.f32.xlu0 %v1257
        %v1259 = vpop.xlane.xlu0 %1258
        %vm1260 = vcmp.eq.f32.partialorder %v1257, %v1259
        %v1261 = vsel %vm1260, %v1256, inf
        %1262 = vmin.xlane.f32.xlu0 %v1261
        %v1263 = vpop.xlane.xlu0 %1262
        %v1264 = vcvt.f32.s32 %v1263
        %v1265 = vcvt.f32.s32 %v1259
        %v1266 = vshll.u32 %v1265, 16
        %v1267 = vadd.s32 %v1266, %v1264
        %vm1268 = vcmask 7168
        %v1269 = vsel %vm1268, %v689, %v849
        %v1270 = vsel %vm1268, %v703, %v863
        %v1271 = vsel %vm1268, %v717, %v877
        %v1272 = vsel %vm1268, %v731, %v891
        %v1273 = vsel %vm1268, %v745, %v905
        %v1274 = vsel %vm1268, %v759, %v919
        %v1275 = vsel %vm1268, %v773, %v933
        %v1276 = vsel %vm1268, %v787, %v947
        %vm1277 = vcmask 15360
        %v1278 = vsel %vm1277, %v1269, %v1009
        %v1279 = vsel %vm1277, %v1270, %v1023
        %v1280 = vsel %vm1277, %v1271, %v1037
        %v1281 = vsel %vm1277, %v1272, %v1051
        %v1282 = vsel %vm1277, %v1273, %v1065
        %v1283 = vsel %vm1277, %v1274, %v1079
        %v1284 = vsel %vm1277, %v1275, %v1093
        %v1285 = vsel %vm1277, %v1276, %v1107
        %vm1286 = vcmask 23552
        %v1287 = vsel %vm1286, %v1278, %v1169
        %v1288 = vsel %vm1286, %v1279, %v1183
        %v1289 = vsel %vm1286, %v1280, %v1197
        %v1290 = vsel %vm1286, %v1281, %v1211
        %v1291 = vsel %vm1286, %v1282, %v1225
        %v1292 = vsel %vm1286, %v1283, %v1239
        %v1293 = vsel %vm1286, %v1284, %v1253
        %v1294 = vsel %vm1286, %v1285, %v1267
        %vm1295 = vcmask 31744
        %1296 = vst.msk [vmem:[%s377] sm:$0xff] %vm1295, %v1287
        %1297 = vst.msk [vmem:[%s377 + $0x8] sm:$0xff] %vm1295, %v1288
        %1298 = vst.msk [vmem:[%s377 + $0x10] sm:$0xff] %vm1295, %v1289
        %1299 = vst.msk [vmem:[%s377 + $0x18] sm:$0xff] %vm1295, %v1290
        %1300 = vst.msk [vmem:[%s377 + $0x20] sm:$0xff] %vm1295, %v1291
        %1301 = vst.msk [vmem:[%s377 + $0x28] sm:$0xff] %vm1295, %v1292
        %1302 = vst.msk [vmem:[%s377 + $0x30] sm:$0xff] %vm1295, %v1293
        %1303 = vst.msk [vmem:[%s377 + $0x38] sm:$0xff] %vm1295, %v1294
        %v1304 = vpack.c.bf16 %v383, %v382
        %v1305 = vpack.c.bf16 %v385, %v384
        %v1306 = vpack.c.bf16 %v387, %v386
        %v1307 = vpack.c.bf16 %v389, %v388
        %v1308 = vld [vmem:[%s4] sm:$0xf]
        %v1309 = vld [vmem:[%s4 + $0x4] sm:$0xf]
        %v1310 = vld [vmem:[%s6] sm:$0x1]
        %v1312 = vperm.slane %v1310, 0
        %v1316 = vunpack.c.l.b16 %v1308
        %v1317 = vunpack.c.l.b16 %v1309
        %v1318 = vpack.c.b16 %v1317, %v1316
        %v1321 = vsel %vm406, %v1304, 0
        %v1324 = vsel %vm406, %v1305, 0
        %v1327 = vsel %vm406, %v1306, 0
        %v1330 = vsel %vm406, %v1307, 0
        %1332 = vmatpush.bf16.msra.mxu0 0
        %1333 = vmatpush.bf16.msra.mxu0 0
        %1334 = vmatpush.bf16.msra.mxu0 0
        %1335 = vmatpush.bf16.msra.mxu0 0
        %1336 = vmatpush.bf16.msra.mxu0 0
        %1337 = vmatpush.bf16.msra.mxu0 0
        %1338 = vmatpush.bf16.msra.mxu0 0
        %1339 = vmatpush.bf16.msra.mxu0 %v1318
        %1340 = vmatmul.bf16.gmra.mxu0 %v1321
        %v1341 = vpop.f32.mrf.mxu0
        %v1342 = vadd.f32 %v1312, %v1341
        %v1343 = vpop.f32.mrf.mxu0
        %v1344 = vadd.f32 %v1312, %v1343
        %1345 = vmatmul.bf16.gmra.mxu0 %v1324
        %v1346 = vpop.f32.mrf.mxu0
        %v1347 = vadd.f32 %v1312, %v1346
        %v1348 = vpop.f32.mrf.mxu0
        %v1349 = vadd.f32 %v1312, %v1348
        %1350 = vmatmul.bf16.gmra.mxu0 %v1327
        %v1351 = vpop.f32.mrf.mxu0
        %v1352 = vadd.f32 %v1312, %v1351
        %v1353 = vpop.f32.mrf.mxu0
        %v1354 = vadd.f32 %v1312, %v1353
        %1355 = vmatmul.bf16.gmra.mxu0 %v1330
        %v1356 = vpop.f32.mrf.mxu0
        %v1357 = vadd.f32 %v1312, %v1356
        %v1358 = vpop.f32.mrf.mxu0
        %v1359 = vadd.f32 %v1312, %v1358
        %1360 = vdwg.mxu0
        %1361 = vst [vmem:[%s353] sm:$0xff] %v1342
        %1362 = vst [vmem:[%s353 + $0x8] sm:$0xff] %v1344
        %1363 = vst [vmem:[%s353 + $0x10] sm:$0xff] %v1347
        %1364 = vst [vmem:[%s353 + $0x18] sm:$0xff] %v1349
        %1365 = vst [vmem:[%s353 + $0x20] sm:$0xff] %v1352
        %1366 = vst [vmem:[%s353 + $0x28] sm:$0xff] %v1354
        %1367 = vst [vmem:[%s353 + $0x30] sm:$0xff] %v1357
        %1368 = vst [vmem:[%s353 + $0x38] sm:$0xff] %v1359
        %v1369 = vld [vmem:[%s5] sm:$0xf]
        %v1370 = vld [vmem:[%s5 + $0x4] sm:$0xf]
        %v1373 = vunpack.c.l.b16 %v1369
        %v1374 = vunpack.c.l.b16 %v1370
        %v1375 = vpack.c.b16 %v1374, %v1373
        %1377 = vmatpush.bf16.msra.mxu0 0
        %1378 = vmatpush.bf16.msra.mxu0 0
        %1379 = vmatpush.bf16.msra.mxu0 0
        %1380 = vmatpush.bf16.msra.mxu0 0
        %1381 = vmatpush.bf16.msra.mxu0 0
        %1382 = vmatpush.bf16.msra.mxu0 0
        %1383 = vmatpush.bf16.msra.mxu0 0
        %1384 = vmatpush.bf16.msra.mxu0 %v1375
        %1385 = vmatmul.bf16.gmra.mxu0 %v1321
        %v1386 = vpop.f32.mrf.mxu0
        %v1387 = vadd.f32 0.0, %v1386
        %v1388 = vpop.f32.mrf.mxu0
        %v1389 = vadd.f32 0.0, %v1388
        %1390 = vmatmul.bf16.gmra.mxu0 %v1324
        %v1391 = vpop.f32.mrf.mxu0
        %v1392 = vadd.f32 0.0, %v1391
        %v1393 = vpop.f32.mrf.mxu0
        %v1394 = vadd.f32 0.0, %v1393
        %1395 = vmatmul.bf16.gmra.mxu0 %v1327
        %v1396 = vpop.f32.mrf.mxu0
        %v1397 = vadd.f32 0.0, %v1396
        %v1398 = vpop.f32.mrf.mxu0
        %v1399 = vadd.f32 0.0, %v1398
        %1400 = vmatmul.bf16.gmra.mxu0 %v1330
        %v1401 = vpop.f32.mrf.mxu0
        %v1402 = vadd.f32 0.0, %v1401
        %v1403 = vpop.f32.mrf.mxu0
        %v1404 = vadd.f32 0.0, %v1403
        %1405 = vdwg.mxu0
        %1406 = vst [vmem:[%s360] sm:$0xff] %v1387
        %1407 = vst [vmem:[%s360 + $0x8] sm:$0xff] %v1389
        %1408 = vst [vmem:[%s360 + $0x10] sm:$0xff] %v1392
        %1409 = vst [vmem:[%s360 + $0x18] sm:$0xff] %v1394
        %1410 = vst [vmem:[%s360 + $0x20] sm:$0xff] %v1397
        %1411 = vst [vmem:[%s360 + $0x28] sm:$0xff] %v1399
        %1412 = vst [vmem:[%s360 + $0x30] sm:$0xff] %v1402
        %1413 = vst [vmem:[%s360 + $0x38] sm:$0xff] %v1404
        %s1414 = smul.u32 8, %s27
        %p1415 = scmp.lt.s32.totalorder %s1414, 15
        %s1416 = scalar_select %p1415, %s1414, 15
        %s1417 = smul.addr %s1416, 8
        %s1418 = scalar_lea.vmem %s7, %s1417
        %s1419 = sand.u32 %s218, 1
        %s1420 = scalar_lea.sflag [#allocation3], %s1419
        %s1421 = sand.u32 %s218, 1
        %s1422 = smul.addr %s1421, 64
        %s1423 = scalar_lea.vmem [#allocation2], %s1422
        %s1424 = sand.u32 %s244, 1
        %s1425 = scalar_lea.sflag [#allocation5], %s1424
        %s1426 = sand.u32 %s244, 1
        %s1427 = smul.addr %s1426, 64
        %s1428 = scalar_lea.vmem [#allocation4], %s1427
        // Predicated region
        $region49: #{tpu_custom_call.1} parent=47 // pred_check
          %p1429 = pneg %p202
        $region50: #{tpu_custom_call.1} parent=47 // pred_check_branch
          %1431 = sbr.rel (%p1429) target = $region52
        $region51: #{tpu_custom_call.1} parent=47 // pred_region
          %s1432 = smul.u32 8, %s27
        $region52: #{tpu_custom_call.1} parent=47 // pred_fallthru
          _
        // Predicated region
        $region53: #{tpu_custom_call.1} parent=47 // pred_check
          %p1433 = pneg %p228
        $region54: #{tpu_custom_call.1} parent=47 // pred_check_branch
          %1435 = sbr.rel (%p1433) target = $region56
        $region55: #{tpu_custom_call.1} parent=47 // pred_region
          %s1436 = smul.u32 8, %s27
          %1438 = vsyncadd %s1420, 0
          %s1439 = smul.addr %s1436, 8
          %s1440 = scalar_lea.hbm %s8, %s1439
          %s1441 = sshll.u32 %s1423, 4
          %s1442 = int_to_ptr.vmem [resolvable:$true] %s1441
          %s1443 = sshll.u32 %s1440, 4
          %s1444 = int_to_ptr.hbm [resolvable:$true] %s1443
          %1449 = dma.vmem_to_hbm [thread:$0]  %s1442, 1024, %s1444, %s1420, 128, 128, 8
        $region56: #{tpu_custom_call.1} parent=47 // pred_fallthru
          _
        // Predicated region
        $region57: #{tpu_custom_call.1} parent=47 // pred_check
          %p1450 = pneg %p254
        $region58: #{tpu_custom_call.1} parent=47 // pred_check_branch
          %1452 = sbr.rel (%p1450) target = $region60
        $region59: #{tpu_custom_call.1} parent=47 // pred_region
          %s1453 = smul.u32 8, %s27
          %1455 = vsyncadd %s1425, 0
          %s1456 = smul.addr %s1453, 8
          %s1457 = scalar_lea.hbm %s9, %s1456
          %s1458 = sshll.u32 %s1428, 4
          %s1459 = int_to_ptr.vmem [resolvable:$true] %s1458
          %s1460 = sshll.u32 %s1457, 4
          %s1461 = int_to_ptr.hbm [resolvable:$true] %s1460
          %1466 = dma.vmem_to_hbm [thread:$0]  %s1459, 1024, %s1461, %s1425, 128, 128, 8
        $region60: #{tpu_custom_call.1} parent=47 // pred_fallthru
          _
      $region48: #{tpu_custom_call.1} parent=5 // pred_fallthru
        _
      %p1467 = scmp.le.s32.totalorder 2, %s22
      // Predicated region
      $region61: #{tpu_custom_call.1} parent=5 // pred_check
        %p1468 = pneg %p1467
      $region62: #{tpu_custom_call.1} parent=5 // pred_check_branch
        %1470 = sbr.rel (%p1468) target = $region64
      $region63: #{tpu_custom_call.1} parent=5 // pred_region
        %s1471 = ssub.s32 %s22, 2
        // Predicated region
        $region65: #{tpu_custom_call.1} parent=63 // pred_check
          %p1472 = pneg %p208
        $region66: #{tpu_custom_call.1} parent=63 // pred_check_branch
          %1474 = sbr.rel (%p1472) target = $region68
        $region67: #{tpu_custom_call.1} parent=63 // pred_region
          %s1475 = smul.u32 8, %s28
          %p1476 = scmp.lt.s32.totalorder %s1475, 15
          %s1477 = scalar_select %p1476, %s1475, 15
          %s1478 = smul.addr %s1477, 8
          %s1479 = scalar_lea.vmem %s7, %s1478
        $region68: #{tpu_custom_call.1} parent=63 // pred_fallthru
          _
        // Predicated region
        $region69: #{tpu_custom_call.1} parent=63 // pred_check
          %p1480 = pneg %p234
        $region70: #{tpu_custom_call.1} parent=63 // pred_check_branch
          %1482 = sbr.rel (%p1480) target = $region72
        $region71: #{tpu_custom_call.1} parent=63 // pred_region
          %s1483 = sand.u32 %s219, 1
          %s1484 = scalar_lea.sflag [#allocation3], %s1483
          %s1485 = sand.u32 %s219, 1
          %s1486 = smul.addr %s1485, 64
          %s1487 = scalar_lea.vmem [#allocation2], %s1486
          %1489 = dma.done %s1484, 1024
        $region72: #{tpu_custom_call.1} parent=63 // pred_fallthru
          _
        // Predicated region
        $region73: #{tpu_custom_call.1} parent=63 // pred_check
          %p1490 = pneg %p260
        $region74: #{tpu_custom_call.1} parent=63 // pred_check_branch
          %1492 = sbr.rel (%p1490) target = $region76
        $region75: #{tpu_custom_call.1} parent=63 // pred_region
          %s1493 = sand.u32 %s245, 1
          %s1494 = scalar_lea.sflag [#allocation5], %s1493
          %s1495 = sand.u32 %s245, 1
          %s1496 = smul.addr %s1495, 64
          %s1497 = scalar_lea.vmem [#allocation4], %s1496
          %1499 = dma.done %s1494, 1024
        $region76: #{tpu_custom_call.1} parent=63 // pred_fallthru
          _
      $region64: #{tpu_custom_call.1} parent=5 // pred_fallthru
        _
    $region6: #{tpu_custom_call.1} parent=1 // loop_footer
      %s26 = sadd.s32 1, %s22
    $region7: #{tpu_custom_call.1} parent=1 // loop_footer_branch
      %21 = sbr.rel target = $region3
    $region8: #{tpu_custom_call.1} parent=1 // loop_exit
      _
    %1500 = vsyncpa [#allocation3], 1
    %s1501 = scalar_lea.sflag [#allocation3], 1
    %1502 = vsyncpa %s1501, 1
    %1503 = vsyncpa [#allocation5], 1
    %s1504 = scalar_lea.sflag [#allocation5], 1
    %1505 = vsyncpa %s1504, 1

</llo_original>
